<compile_context>
chip_gen: v7x
topology: tpu7x:2x2x1
jax: 0.10.0
libtpu: 0.0.40
codegen_flags: <defaults>
</compile_context>

<pallas_src>
import functools

import jax
import jax.numpy as jnp
import numpy as np
from jax.experimental import pallas as pl
from jax.experimental.pallas import tpu as pltpu


# ---------------------------------------------------------------------------
# Fused multi-step decoder kernel (one grid step == one decoder time step).
# ---------------------------------------------------------------------------
def _fused_decode_kernel(tok_ref,                       # SMEM (T, B) int32  [scalar prefetch]
                         h0_ref,                        # VMEM (B, H)
                         enc_ref,                       # VMEM (B, L, H)
                         emb_ref,                       # VMEM (VOCAB, H)
                         wih_ref, whh_ref,              # VMEM (3, H, H)
                         bih_ref, bhh_ref,              # VMEM (3, 1, H)
                         wch_ref, wcc_ref,              # VMEM (H, H)
                         bc_ref,                        # VMEM (1, H)
                         wo_ref,                        # VMEM (H, O_pad)
                         bo_ref,                        # VMEM (1, O_pad)
                         out_ref,                       # VMEM (1, B, O_pad)   per-step probs
                         hfin_ref,                      # VMEM (B, H)          final hidden
                         h_state,                       # VMEM scratch (B, H)  recurrent state
                         *, B, O):
    t = pl.program_id(0)

    # ---- init recurrent state from last_hidden on the first step ----
    @pl.when(t == 0)
    def _():
        h_state[...] = h0_ref[...]

    # ---- embedding gather (table resident in VMEM, token ids from SMEM) ----
    rows = [emb_ref[pl.ds(tok_ref[t, b], 1), :] for b in range(B)]   # each (1, H)
    x = jnp.concatenate(rows, axis=0)                                # (B, H)
    # TODO(synk): embedding_dropout (nn.Dropout) is identity in eval mode.

    h = h_state[...]                                                 # (B, H)

    # ---- single-step GRU; gates stored per-slab (r, z, n) -> free leading-axis index ----
    gi_r = jnp.dot(x, wih_ref[0], preferred_element_type=jnp.float32) + bih_ref[0]
    gi_z = jnp.dot(x, wih_ref[1], preferred_element_type=jnp.float32) + bih_ref[1]
    gi_n = jnp.dot(x, wih_ref[2], preferred_element_type=jnp.float32) + bih_ref[2]
    gh_r = jnp.dot(h, whh_ref[0], preferred_element_type=jnp.float32) + bhh_ref[0]
    gh_z = jnp.dot(h, whh_ref[1], preferred_element_type=jnp.float32) + bhh_ref[1]
    gh_n = jnp.dot(h, whh_ref[2], preferred_element_type=jnp.float32) + bhh_ref[2]
    r = jax.nn.sigmoid(gi_r + gh_r)
    z = jax.nn.sigmoid(gi_z + gh_z)
    n = jnp.tanh(gi_n + r * gh_n)
    h_new = (1.0 - z) * n + z * h                                    # (B, H)

    # ---- dot attention on (B, L, H): batched MXU einsums, no transposes ----
    enc = enc_ref[...]                                               # (B, L, H)
    scores = jnp.einsum("bqh,blh->bql", h_new[:, None, :], enc,
                        preferred_element_type=jnp.float32)          # (B, 1, L)
    m = jnp.max(scores, axis=-1, keepdims=True)
    e = jnp.exp(scores - m)
    attn = e * pl.reciprocal(jnp.sum(e, axis=-1, keepdims=True))     # (B, 1, L)
    context = jnp.einsum("bql,blh->bqh", attn, enc,
                         preferred_element_type=jnp.float32)[:, 0, :]  # (B, H)

    # ---- concat Linear without a lane-axis concatenate ----
    concat_out = jnp.tanh(
        jnp.dot(h_new, wch_ref[...], preferred_element_type=jnp.float32)
        + jnp.dot(context, wcc_ref[...], preferred_element_type=jnp.float32)
        + bc_ref[...])                                               # (B, H)

    # ---- out Linear into a lane-dense 128-wide slab + masked softmax ----
    logits = (jnp.dot(concat_out, wo_ref[...], preferred_element_type=jnp.float32)
              + bo_ref[...])                                         # (B, O_pad)
    col = jax.lax.broadcasted_iota(jnp.int32, logits.shape, 1)
    logits = jnp.where(col < O, logits, jnp.float32(-1e30))
    m2 = jnp.max(logits, axis=1, keepdims=True)
    e2 = jnp.exp(logits - m2)
    out_ref[0] = e2 * pl.reciprocal(jnp.sum(e2, axis=1, keepdims=True))

    # ---- carry hidden state, emit final hidden only on the last step ----
    h_state[...] = h_new

    @pl.when(t == pl.num_programs(0) - 1)
    def _():
        hfin_ref[...] = h_new


# ---------------------------------------------------------------------------
# Wrapper: one-time layout plumbing + fused pallas_call over T decode steps.
# ---------------------------------------------------------------------------
def _prepare_params(params, o_pad):
    H = params["embedding"].shape[1]
    O = params["w_out"].shape[1]
    w_ih, w_hh = params["w_ih"], params["w_hh"]          # (H, 3H), gate order r|z|n
    wih = jnp.stack([w_ih[:, :H], w_ih[:, H:2 * H], w_ih[:, 2 * H:]], axis=0)   # (3, H, H)
    whh = jnp.stack([w_hh[:, :H], w_hh[:, H:2 * H], w_hh[:, 2 * H:]], axis=0)   # (3, H, H)
    bih = params["b_ih"].reshape(3, 1, H)
    bhh = params["b_hh"].reshape(3, 1, H)
    wch = params["w_concat"][:H]                         # (H, H) -> h_new path
    wcc = params["w_concat"][H:]                         # (H, H) -> context path
    bc = params["b_concat"]                              # (1, H)
    wo = jnp.zeros((H, o_pad), jnp.float32).at[:, :O].set(params["w_out"])
    bo = jnp.zeros((1, o_pad), jnp.float32).at[:, :O].set(params["b_out"])
    return wih, whh, bih, bhh, wch, wcc, bc, wo, bo


@jax.jit
def luong_attn_decode(tokens, last_hidden, encoder_outputs, params):
    """Fused T-step (teacher-forced) Luong decoder.

    tokens: (T, B) int32; last_hidden: (1, B, H); encoder_outputs: (L, B, H).
    Returns (probs (T, B, O), hidden (1, B, H)).
    """
    T, B = tokens.shape
    L, _, H = encoder_outputs.shape
    O = params["w_out"].shape[1]
    O_pad = ((O + 127) // 128) * 128
    VOCAB = params["embedding"].shape[0]

    enc_blh = jnp.transpose(encoder_outputs, (1, 0, 2))   # (B, L, H), one-time layout plumbing
    h0 = last_hidden[0]                                   # (B, H)
    wih, whh, bih, bhh, wch, wcc, bc, wo, bo = _prepare_params(params, O_pad)

    kernel = functools.partial(_fused_decode_kernel, B=B, O=O)

    grid_spec = pltpu.PrefetchScalarGridSpec(
        num_scalar_prefetch=1,
        grid=(T,),
        in_specs=[
            pl.BlockSpec((B, H), lambda t, tok: (0, 0)),           # h0
            pl.BlockSpec((B, L, H), lambda t, tok: (0, 0, 0)),     # encoder outputs (B,L,H)
            pl.BlockSpec((VOCAB, H), lambda t, tok: (0, 0)),       # embedding table
            pl.BlockSpec((3, H, H), lambda t, tok: (0, 0, 0)),     # w_ih (per-gate slabs)
            pl.BlockSpec((3, H, H), lambda t, tok: (0, 0, 0)),     # w_hh
            pl.BlockSpec((3, 1, H), lambda t, tok: (0, 0, 0)),     # b_ih
            pl.BlockSpec((3, 1, H), lambda t, tok: (0, 0, 0)),     # b_hh
            pl.BlockSpec((H, H), lambda t, tok: (0, 0)),           # w_concat (h half)
            pl.BlockSpec((H, H), lambda t, tok: (0, 0)),           # w_concat (ctx half)
            pl.BlockSpec((1, H), lambda t, tok: (0, 0)),           # b_concat
            pl.BlockSpec((H, O_pad), lambda t, tok: (0, 0)),       # w_out (lane-padded)
            pl.BlockSpec((1, O_pad), lambda t, tok: (0, 0)),       # b_out (lane-padded)
        ],
        out_specs=(
            pl.BlockSpec((1, B, O_pad), lambda t, tok: (t, 0, 0)),  # per-step probs
            pl.BlockSpec((B, H), lambda t, tok: (0, 0)),            # final hidden
        ),
        scratch_shapes=[pltpu.VMEM((B, H), jnp.float32)],
    )

    probs_pad, h_fin = pl.pallas_call(
        kernel,
        grid_spec=grid_spec,
        out_shape=(jax.ShapeDtypeStruct((T, B, O_pad), jnp.float32),
                   jax.ShapeDtypeStruct((B, H), jnp.float32)),
        compiler_params=pltpu.CompilerParams(dimension_semantics=("arbitrary",)),
    )(tokens, h0, enc_blh, params["embedding"],
      wih, whh, bih, bhh, wch, wcc, bc, wo, bo)

    return probs_pad[:, :, :O], h_fin[None]


def luong_attn_decoder_forward(input_step, last_hidden, encoder_outputs, params):
    """Single decoder step == LuongAttnDecoderRNN.forward (input_step: (1, B) int32)."""
    probs, hidden = luong_attn_decode(input_step, last_hidden, encoder_outputs, params)
    return probs[0], hidden


# ---------------------------------------------------------------------------
# Pure-JAX reference (ground truth; matches the PyTorch module step by step)
# ---------------------------------------------------------------------------
def reference_step(token_row, h, encoder_outputs, params):
    H = params["embedding"].shape[1]
    x = params["embedding"][token_row]                              # (B, H)
    gi = x @ params["w_ih"] + params["b_ih"]
    gh = h @ params["w_hh"] + params["b_hh"]
    r = jax.nn.sigmoid(gi[:, :H] + gh[:, :H])
    z = jax.nn.sigmoid(gi[:, H:2 * H] + gh[:, H:2 * H])
    n = jnp.tanh(gi[:, 2 * H:] + r * gh[:, 2 * H:])
    h_new = (1.0 - z) * n + z * h
    scores = jnp.sum(h_new[None] * encoder_outputs, axis=2)         # (L, B)
    attn = jax.nn.softmax(scores.T, axis=1)                         # (B, L)
    context = jnp.einsum("bl,lbh->bh", attn, encoder_outputs)
    concat_in = jnp.concatenate([h_new, context], axis=1)
    concat_out = jnp.tanh(concat_in @ params["w_concat"] + params["b_concat"])
    logits = concat_out @ params["w_out"] + params["b_out"]
    return jax.nn.softmax(logits, axis=1), h_new


def reference_decode(tokens, last_hidden, encoder_outputs, params):
    h = last_hidden[0]
    outs = []
    for t in range(tokens.shape[0]):
        probs, h = reference_step(tokens[t], h, encoder_outputs, params)
        outs.append(probs)
    return jnp.stack(outs, axis=0), h[None]


# ---------------------------------------------------------------------------
# Main
# ---------------------------------------------------------------------------
if __name__ == "__main__":
    VOCAB, H, B, L, O = 20, 32, 2, 8, 16
    T = 4   # extra fused multi-step decode test

    key = jax.random.PRNGKey(0)
    ks = jax.random.split(key, 12)
    u = lambda k, shape, s: jax.random.uniform(k, shape, jnp.float32, -s, s)
    bound = 1.0 / np.sqrt(H)

    params = {
        "embedding": jax.random.normal(ks[0], (VOCAB, H), jnp.float32),
        # GRU weights stored transposed for x @ W:  (H, 3H), gate order r|z|n
        "w_ih": u(ks[1], (H, 3 * H), bound),
        "w_hh": u(ks[2], (H, 3 * H), bound),
        "b_ih": u(ks[3], (1, 3 * H), bound),
        "b_hh": u(ks[4], (1, 3 * H), bound),
        "w_concat": u(ks[5], (2 * H, H), 1.0 / np.sqrt(2 * H)),
        "b_concat": u(ks[6], (1, H), 1.0 / np.sqrt(2 * H)),
        "w_out": u(ks[7], (H, O), bound),
        "b_out": u(ks[8], (1, O), bound),
    }

    input_step = jax.random.randint(ks[9], (1, B), 0, VOCAB, jnp.int32)   # (1, B)
    last_hidden = jax.random.normal(ks[10], (1, B, H), jnp.float32)       # (n_layers=1, B, H)
    encoder_outputs = jax.random.normal(ks[11], (L, B, H), jnp.float32)   # (L, B, H)

    # --- module-semantics single step (matches LuongAttnDecoderRNN.forward) ---
    out, hidden = luong_attn_decoder_forward(input_step, last_hidden, encoder_outputs, params)
    out = jax.block_until_ready(out)
    hidden = jax.block_until_ready(hidden)

    out_ref, hidden_ref = reference_decode(input_step, last_hidden, encoder_outputs, params)
    np.testing.assert_allclose(np.asarray(out), np.asarray(out_ref[0]), rtol=2e-5, atol=2e-5)
    np.testing.assert_allclose(np.asarray(hidden), np.asarray(hidden_ref), rtol=2e-5, atol=2e-5)
    assert out.shape == (B, O) and hidden.shape == (1, B, H)

    # --- fused multi-step (teacher-forced) decode: one kernel for all T steps ---
    tokens = jax.random.randint(jax.random.PRNGKey(1), (T, B), 0, VOCAB, jnp.int32)
    probs_seq, hidden_seq = luong_attn_decode(tokens, last_hidden, encoder_outputs, params)
    probs_seq = jax.block_until_ready(probs_seq)
    hidden_seq = jax.block_until_ready(hidden_seq)

    probs_seq_ref, hidden_seq_ref = reference_decode(tokens, last_hidden, encoder_outputs, params)
    np.testing.assert_allclose(np.asarray(probs_seq), np.asarray(probs_seq_ref),
                               rtol=2e-5, atol=2e-5)
    np.testing.assert_allclose(np.asarray(hidden_seq), np.asarray(hidden_seq_ref),
                               rtol=2e-5, atol=2e-5)

    print("KERNEL_OK")
</pallas_src>

<mosaic_0001>
module attributes {stable_mosaic.version = 11 : i64} {
  func.func @_fused_decode_kernel(%arg0: i32, %arg1: memref<1x2xi32, #tpu.memory_space<smem>>, %arg2: memref<2x32xf32, #tpu.memory_space<vmem>>, %arg3: memref<2x8x32xf32, #tpu.memory_space<vmem>>, %arg4: memref<20x32xf32, #tpu.memory_space<vmem>>, %arg5: memref<3x32x32xf32, #tpu.memory_space<vmem>>, %arg6: memref<3x32x32xf32, #tpu.memory_space<vmem>>, %arg7: memref<3x1x32xf32, #tpu.memory_space<vmem>>, %arg8: memref<3x1x32xf32, #tpu.memory_space<vmem>>, %arg9: memref<32x32xf32, #tpu.memory_space<vmem>>, %arg10: memref<32x32xf32, #tpu.memory_space<vmem>>, %arg11: memref<1x32xf32, #tpu.memory_space<vmem>>, %arg12: memref<32x128xf32, #tpu.memory_space<vmem>>, %arg13: memref<1x128xf32, #tpu.memory_space<vmem>>, %arg14: memref<1x2x128xf32, #tpu.memory_space<vmem>>, %arg15: memref<2x32xf32, #tpu.memory_space<vmem>>, %arg16: memref<2x32xf32, #tpu.memory_space<vmem>>) attributes {dimension_semantics = [#tpu.dimension_semantics<arbitrary>], iteration_bounds = array<i64: 1>, scalar_prefetch = 1 : i64, scratch_operands = 1 : i64, tpu.core_type = #tpu.core_type<tc>, window_params = [{pipeline_mode = #tpu.pipeline_mode<synchronous>, transform_indices = @transform_0, window_bounds = array<i64: 2, 32>}, {pipeline_mode = #tpu.pipeline_mode<synchronous>, transform_indices = @transform_1, window_bounds = array<i64: 2, 8, 32>}, {pipeline_mode = #tpu.pipeline_mode<synchronous>, transform_indices = @transform_2, window_bounds = array<i64: 20, 32>}, {pipeline_mode = #tpu.pipeline_mode<synchronous>, transform_indices = @transform_3, window_bounds = array<i64: 3, 32, 32>}, {pipeline_mode = #tpu.pipeline_mode<synchronous>, transform_indices = @transform_4, window_bounds = array<i64: 3, 32, 32>}, {pipeline_mode = #tpu.pipeline_mode<synchronous>, transform_indices = @transform_5, window_bounds = array<i64: 3, 1, 32>}, {pipeline_mode = #tpu.pipeline_mode<synchronous>, transform_indices = @transform_6, window_bounds = array<i64: 3, 1, 32>}, {pipeline_mode = #tpu.pipeline_mode<synchronous>, transform_indices = @transform_7, window_bounds = array<i64: 32, 32>}, {pipeline_mode = #tpu.pipeline_mode<synchronous>, transform_indices = @transform_8, window_bounds = array<i64: 32, 32>}, {pipeline_mode = #tpu.pipeline_mode<synchronous>, transform_indices = @transform_9, window_bounds = array<i64: 1, 32>}, {pipeline_mode = #tpu.pipeline_mode<synchronous>, transform_indices = @transform_10, window_bounds = array<i64: 32, 128>}, {pipeline_mode = #tpu.pipeline_mode<synchronous>, transform_indices = @transform_11, window_bounds = array<i64: 1, 128>}, {transform_indices = @transform_12, window_bounds = array<i64: 1, 2, 128>}, {pipeline_mode = #tpu.pipeline_mode<synchronous>, transform_indices = @transform_13, window_bounds = array<i64: 2, 32>}]} {
    %c0_i32 = arith.constant 0 : i32
    %0 = arith.cmpi eq, %arg0, %c0_i32 : i32
    %1 = arith.extui %0 : i1 to i32
    %c0_i32_0 = arith.constant 0 : i32
    %2 = arith.cmpi ne, %1, %c0_i32_0 : i32
    scf.if %2 {
      %c0_78 = arith.constant 0 : index
      %c0_79 = arith.constant 0 : index
      %126 = vector.load %arg2[%c0_78, %c0_79] : memref<2x32xf32, #tpu.memory_space<vmem>>, vector<2x32xf32>
      %c0_80 = arith.constant 0 : index
      %c0_81 = arith.constant 0 : index
      %127 = vector.load %arg16[%c0_80, %c0_81] : memref<2x32xf32, #tpu.memory_space<vmem>>, vector<2x32xf32>
      tpu.vector_store %arg16[%c0_80, %c0_81], %126 {strides = array<i32>} : memref<2x32xf32, #tpu.memory_space<vmem>>, vector<2x32xf32>,
    } else {
    }
    %3 = arith.index_cast %arg0 : i32 to index
    %c0 = arith.constant 0 : index
    %4 = memref.load %arg1[%3, %c0] : memref<1x2xi32, #tpu.memory_space<smem>>
    %5 = arith.index_cast %4 : i32 to index
    %c0_1 = arith.constant 0 : index
    %6 = vector.load %arg4[%5, %c0_1] : memref<20x32xf32, #tpu.memory_space<vmem>>, vector<1x32xf32>
    %7 = arith.index_cast %arg0 : i32 to index
    %c1 = arith.constant 1 : index
    %8 = memref.load %arg1[%7, %c1] : memref<1x2xi32, #tpu.memory_space<smem>>
    %9 = arith.index_cast %8 : i32 to index
    %c0_2 = arith.constant 0 : index
    %10 = vector.load %arg4[%9, %c0_2] : memref<20x32xf32, #tpu.memory_space<vmem>>, vector<1x32xf32>
    %11 = tpu.concatenate %6, %10 in 0 : vector<1x32xf32>, vector<1x32xf32> -> vector<2x32xf32>
    %c0_3 = arith.constant 0 : index
    %c0_4 = arith.constant 0 : index
    %12 = vector.load %arg16[%c0_3, %c0_4] : memref<2x32xf32, #tpu.memory_space<vmem>>, vector<2x32xf32>
    %c0_5 = arith.constant 0 : index
    %c0_6 = arith.constant 0 : index
    %c0_7 = arith.constant 0 : index
    %13 = vector.load %arg5[%c0_5, %c0_6, %c0_7] : memref<3x32x32xf32, #tpu.memory_space<vmem>>, vector<1x32x32xf32>
    %14 = vector.shape_cast %13 : vector<1x32x32xf32> to vector<32x32xf32>
    %cst = arith.constant dense<0.000000e+00> : vector<2x32xf32>
    %15 = tpu.matmul %11, %14, %cst {dimension_numbers = #tpu.dot_dimension_numbers<[1], [0], [0], [1], [0, 0, 1, 1], [], []>} : vector<2x32xf32>, vector<32x32xf32>, vector<2x32xf32> -> vector<2x32xf32>
    %c0_8 = arith.constant 0 : index
    %c0_9 = arith.constant 0 : index
    %c0_10 = arith.constant 0 : index
    %16 = vector.load %arg7[%c0_8, %c0_9, %c0_10] : memref<3x1x32xf32, #tpu.memory_space<vmem>>, vector<1x1x32xf32>
    %17 = vector.shape_cast %16 : vector<1x1x32xf32> to vector<1x32xf32>
    %18 = vector.broadcast %17 : vector<1x32xf32> to vector<2x32xf32>
    %19 = arith.addf %15, %18 : vector<2x32xf32>
    %c1_11 = arith.constant 1 : index
    %c0_12 = arith.constant 0 : index
    %c0_13 = arith.constant 0 : index
    %20 = vector.load %arg5[%c1_11, %c0_12, %c0_13] : memref<3x32x32xf32, #tpu.memory_space<vmem>>, vector<1x32x32xf32>
    %21 = vector.shape_cast %20 : vector<1x32x32xf32> to vector<32x32xf32>
    %cst_14 = arith.constant dense<0.000000e+00> : vector<2x32xf32>
    %22 = tpu.matmul %11, %21, %cst_14 {dimension_numbers = #tpu.dot_dimension_numbers<[1], [0], [0], [1], [0, 0, 1, 1], [], []>} : vector<2x32xf32>, vector<32x32xf32>, vector<2x32xf32> -> vector<2x32xf32>
    %c1_15 = arith.constant 1 : index
    %c0_16 = arith.constant 0 : index
    %c0_17 = arith.constant 0 : index
    %23 = vector.load %arg7[%c1_15, %c0_16, %c0_17] : memref<3x1x32xf32, #tpu.memory_space<vmem>>, vector<1x1x32xf32>
    %24 = vector.shape_cast %23 : vector<1x1x32xf32> to vector<1x32xf32>
    %25 = vector.broadcast %24 : vector<1x32xf32> to vector<2x32xf32>
    %26 = arith.addf %22, %25 : vector<2x32xf32>
    %c2 = arith.constant 2 : index
    %c0_18 = arith.constant 0 : index
    %c0_19 = arith.constant 0 : index
    %27 = vector.load %arg5[%c2, %c0_18, %c0_19] : memref<3x32x32xf32, #tpu.memory_space<vmem>>, vector<1x32x32xf32>
    %28 = vector.shape_cast %27 : vector<1x32x32xf32> to vector<32x32xf32>
    %cst_20 = arith.constant dense<0.000000e+00> : vector<2x32xf32>
    %29 = tpu.matmul %11, %28, %cst_20 {dimension_numbers = #tpu.dot_dimension_numbers<[1], [0], [0], [1], [0, 0, 1, 1], [], []>} : vector<2x32xf32>, vector<32x32xf32>, vector<2x32xf32> -> vector<2x32xf32>
    %c2_21 = arith.constant 2 : index
    %c0_22 = arith.constant 0 : index
    %c0_23 = arith.constant 0 : index
    %30 = vector.load %arg7[%c2_21, %c0_22, %c0_23] : memref<3x1x32xf32, #tpu.memory_space<vmem>>, vector<1x1x32xf32>
    %31 = vector.shape_cast %30 : vector<1x1x32xf32> to vector<1x32xf32>
    %32 = vector.broadcast %31 : vector<1x32xf32> to vector<2x32xf32>
    %33 = arith.addf %29, %32 : vector<2x32xf32>
    %c0_24 = arith.constant 0 : index
    %c0_25 = arith.constant 0 : index
    %c0_26 = arith.constant 0 : index
    %34 = vector.load %arg6[%c0_24, %c0_25, %c0_26] : memref<3x32x32xf32, #tpu.memory_space<vmem>>, vector<1x32x32xf32>
    %35 = vector.shape_cast %34 : vector<1x32x32xf32> to vector<32x32xf32>
    %cst_27 = arith.constant dense<0.000000e+00> : vector<2x32xf32>
    %36 = tpu.matmul %12, %35, %cst_27 {dimension_numbers = #tpu.dot_dimension_numbers<[1], [0], [0], [1], [0, 0, 1, 1], [], []>} : vector<2x32xf32>, vector<32x32xf32>, vector<2x32xf32> -> vector<2x32xf32>
    %c0_28 = arith.constant 0 : index
    %c0_29 = arith.constant 0 : index
    %c0_30 = arith.constant 0 : index
    %37 = vector.load %arg8[%c0_28, %c0_29, %c0_30] : memref<3x1x32xf32, #tpu.memory_space<vmem>>, vector<1x1x32xf32>
    %38 = vector.shape_cast %37 : vector<1x1x32xf32> to vector<1x32xf32>
    %39 = vector.broadcast %38 : vector<1x32xf32> to vector<2x32xf32>
    %40 = arith.addf %36, %39 : vector<2x32xf32>
    %c1_31 = arith.constant 1 : index
    %c0_32 = arith.constant 0 : index
    %c0_33 = arith.constant 0 : index
    %41 = vector.load %arg6[%c1_31, %c0_32, %c0_33] : memref<3x32x32xf32, #tpu.memory_space<vmem>>, vector<1x32x32xf32>
    %42 = vector.shape_cast %41 : vector<1x32x32xf32> to vector<32x32xf32>
    %cst_34 = arith.constant dense<0.000000e+00> : vector<2x32xf32>
    %43 = tpu.matmul %12, %42, %cst_34 {dimension_numbers = #tpu.dot_dimension_numbers<[1], [0], [0], [1], [0, 0, 1, 1], [], []>} : vector<2x32xf32>, vector<32x32xf32>, vector<2x32xf32> -> vector<2x32xf32>
    %c1_35 = arith.constant 1 : index
    %c0_36 = arith.constant 0 : index
    %c0_37 = arith.constant 0 : index
    %44 = vector.load %arg8[%c1_35, %c0_36, %c0_37] : memref<3x1x32xf32, #tpu.memory_space<vmem>>, vector<1x1x32xf32>
    %45 = vector.shape_cast %44 : vector<1x1x32xf32> to vector<1x32xf32>
    %46 = vector.broadcast %45 : vector<1x32xf32> to vector<2x32xf32>
    %47 = arith.addf %43, %46 : vector<2x32xf32>
    %c2_38 = arith.constant 2 : index
    %c0_39 = arith.constant 0 : index
    %c0_40 = arith.constant 0 : index
    %48 = vector.load %arg6[%c2_38, %c0_39, %c0_40] : memref<3x32x32xf32, #tpu.memory_space<vmem>>, vector<1x32x32xf32>
    %49 = vector.shape_cast %48 : vector<1x32x32xf32> to vector<32x32xf32>
    %cst_41 = arith.constant dense<0.000000e+00> : vector<2x32xf32>
    %50 = tpu.matmul %12, %49, %cst_41 {dimension_numbers = #tpu.dot_dimension_numbers<[1], [0], [0], [1], [0, 0, 1, 1], [], []>} : vector<2x32xf32>, vector<32x32xf32>, vector<2x32xf32> -> vector<2x32xf32>
    %c2_42 = arith.constant 2 : index
    %c0_43 = arith.constant 0 : index
    %c0_44 = arith.constant 0 : index
    %51 = vector.load %arg8[%c2_42, %c0_43, %c0_44] : memref<3x1x32xf32, #tpu.memory_space<vmem>>, vector<1x1x32xf32>
    %52 = vector.shape_cast %51 : vector<1x1x32xf32> to vector<1x32xf32>
    %53 = vector.broadcast %52 : vector<1x32xf32> to vector<2x32xf32>
    %54 = arith.addf %50, %53 : vector<2x32xf32>
    %55 = arith.addf %19, %40 : vector<2x32xf32>
    %56 = arith.negf %55 : vector<2x32xf32>
    %57 = math.exp %56 : vector<2x32xf32>
    %cst_45 = arith.constant 1.000000e+00 : f32
    %58 = vector.broadcast %cst_45 : f32 to vector<2x32xf32>
    %59 = arith.addf %58, %57 : vector<2x32xf32>
    %60 = arith.divf %58, %59 : vector<2x32xf32>
    %61 = arith.addf %26, %47 : vector<2x32xf32>
    %62 = arith.negf %61 : vector<2x32xf32>
    %63 = math.exp %62 : vector<2x32xf32>
    %cst_46 = arith.constant 1.000000e+00 : f32
    %64 = vector.broadcast %cst_46 : f32 to vector<2x32xf32>
    %65 = arith.addf %64, %63 : vector<2x32xf32>
    %66 = arith.divf %64, %65 : vector<2x32xf32>
    %67 = arith.mulf %60, %54 : vector<2x32xf32>
    %68 = arith.addf %33, %67 : vector<2x32xf32>
    %69 = math.tanh %68 : vector<2x32xf32>
    %cst_47 = arith.constant 1.000000e+00 : f32
    %70 = vector.broadcast %cst_47 : f32 to vector<2x32xf32>
    %71 = arith.subf %70, %66 : vector<2x32xf32>
    %72 = arith.mulf %71, %69 : vector<2x32xf32>
    %73 = arith.mulf %66, %12 : vector<2x32xf32>
    %74 = arith.addf %72, %73 : vector<2x32xf32>
    %c0_48 = arith.constant 0 : index
    %c0_49 = arith.constant 0 : index
    %c0_50 = arith.constant 0 : index
    %75 = vector.load %arg3[%c0_48, %c0_49, %c0_50] : memref<2x8x32xf32, #tpu.memory_space<vmem>>, vector<2x8x32xf32>
    %76 = vector.shape_cast %74 : vector<2x32xf32> to vector<2x1x32xf32>
    "tpu.trace_start"() <{level = 10 : i32, message = "bqh,blh->bql"}> : () -> ()
    %cst_51 = arith.constant dense<0.000000e+00> : vector<2x1x8xf32>
    %77 = tpu.matmul %76, %75, %cst_51 {dimension_numbers = #tpu.dot_dimension_numbers<[2], [2], [1], [1], [0, 0, 0, 1, 1, 1], [0], [0]>} : vector<2x1x32xf32>, vector<2x8x32xf32>, vector<2x1x8xf32> -> vector<2x1x8xf32>
    "tpu.trace_stop"() : () -> ()
    %cst_52 = arith.constant dense<0xFF800000> : vector<2x1xf32>
    %78 = vector.multi_reduction <maximumf>, %77, %cst_52 [2] : vector<2x1x8xf32> to vector<2x1xf32>
    %79 = vector.shape_cast %78 : vector<2x1xf32> to vector<2x1x1xf32>
    %80 = vector.broadcast %79 : vector<2x1x1xf32> to vector<2x1x8xf32>
    %81 = arith.subf %77, %80 : vector<2x1x8xf32>
    %82 = math.exp %81 : vector<2x1x8xf32>
    %cst_53 = arith.constant dense<0.000000e+00> : vector<2x1xf32>
    %83 = vector.multi_reduction <add>, %82, %cst_53 [2] : vector<2x1x8xf32> to vector<2x1xf32>
    %84 = vector.shape_cast %83 : vector<2x1xf32> to vector<2x1x1xf32>
    %85 = tpu.reciprocal %84 : vector<2x1x1xf32> -> vector<2x1x1xf32>
    %86 = vector.broadcast %85 : vector<2x1x1xf32> to vector<2x1x8xf32>
    %87 = arith.mulf %82, %86 : vector<2x1x8xf32>
    "tpu.trace_start"() <{level = 10 : i32, message = "bql,blh->bqh"}> : () -> ()
    %cst_54 = arith.constant dense<0.000000e+00> : vector<2x1x32xf32>
    %88 = tpu.matmul %87, %75, %cst_54 {dimension_numbers = #tpu.dot_dimension_numbers<[2], [1], [1], [2], [0, 0, 0, 1, 1, 2], [0], [0]>} : vector<2x1x8xf32>, vector<2x8x32xf32>, vector<2x1x32xf32> -> vector<2x1x32xf32>
    "tpu.trace_stop"() : () -> ()
    %89 = vector.shape_cast %88 : vector<2x1x32xf32> to vector<2x32xf32>
    %c0_55 = arith.constant 0 : index
    %c0_56 = arith.constant 0 : index
    %90 = vector.load %arg9[%c0_55, %c0_56] : memref<32x32xf32, #tpu.memory_space<vmem>>, vector<32x32xf32>
    %cst_57 = arith.constant dense<0.000000e+00> : vector<2x32xf32>
    %91 = tpu.matmul %74, %90, %cst_57 {dimension_numbers = #tpu.dot_dimension_numbers<[1], [0], [0], [1], [0, 0, 1, 1], [], []>} : vector<2x32xf32>, vector<32x32xf32>, vector<2x32xf32> -> vector<2x32xf32>
    %c0_58 = arith.constant 0 : index
    %c0_59 = arith.constant 0 : index
    %92 = vector.load %arg10[%c0_58, %c0_59] : memref<32x32xf32, #tpu.memory_space<vmem>>, vector<32x32xf32>
    %cst_60 = arith.constant dense<0.000000e+00> : vector<2x32xf32>
    %93 = tpu.matmul %89, %92, %cst_60 {dimension_numbers = #tpu.dot_dimension_numbers<[1], [0], [0], [1], [0, 0, 1, 1], [], []>} : vector<2x32xf32>, vector<32x32xf32>, vector<2x32xf32> -> vector<2x32xf32>
    %94 = arith.addf %91, %93 : vector<2x32xf32>
    %c0_61 = arith.constant 0 : index
    %c0_62 = arith.constant 0 : index
    %95 = vector.load %arg11[%c0_61, %c0_62] : memref<1x32xf32, #tpu.memory_space<vmem>>, vector<1x32xf32>
    %96 = vector.broadcast %95 : vector<1x32xf32> to vector<2x32xf32>
    %97 = arith.addf %94, %96 : vector<2x32xf32>
    %98 = math.tanh %97 : vector<2x32xf32>
    %c0_63 = arith.constant 0 : index
    %c0_64 = arith.constant 0 : index
    %99 = vector.load %arg12[%c0_63, %c0_64] : memref<32x128xf32, #tpu.memory_space<vmem>>, vector<32x128xf32>
    %cst_65 = arith.constant dense<0.000000e+00> : vector<2x128xf32>
    %100 = tpu.matmul %98, %99, %cst_65 {dimension_numbers = #tpu.dot_dimension_numbers<[1], [0], [0], [1], [0, 0, 1, 1], [], []>} : vector<2x32xf32>, vector<32x128xf32>, vector<2x128xf32> -> vector<2x128xf32>
    %c0_66 = arith.constant 0 : index
    %c0_67 = arith.constant 0 : index
    %101 = vector.load %arg13[%c0_66, %c0_67] : memref<1x128xf32, #tpu.memory_space<vmem>>, vector<1x128xf32>
    %102 = vector.broadcast %101 : vector<1x128xf32> to vector<2x128xf32>
    %103 = arith.addf %100, %102 : vector<2x128xf32>
    %104 = tpu.iota {dimensions = array<i32: 1>} : vector<2x128xi32>
    %c16_i32 = arith.constant 16 : i32
    %105 = vector.broadcast %c16_i32 : i32 to vector<2x128xi32>
    %106 = arith.cmpi slt, %104, %105 : vector<2x128xi32>
    %cst_68 = arith.constant -1.000000e+30 : f32
    %107 = vector.broadcast %cst_68 : f32 to vector<2x128xf32>
    %108 = arith.select %106, %103, %107 : vector<2x128xi1>, vector<2x128xf32>
    %cst_69 = arith.constant dense<0xFF800000> : vector<2xf32>
    %109 = vector.multi_reduction <maximumf>, %108, %cst_69 [1] : vector<2x128xf32> to vector<2xf32>
    %110 = vector.shape_cast %109 : vector<2xf32> to vector<2x1xf32>
    %111 = vector.broadcast %110 : vector<2x1xf32> to vector<2x128xf32>
    %112 = arith.subf %108, %111 : vector<2x128xf32>
    %113 = math.exp %112 : vector<2x128xf32>
    %cst_70 = arith.constant dense<0.000000e+00> : vector<2xf32>
    %114 = vector.multi_reduction <add>, %113, %cst_70 [1] : vector<2x128xf32> to vector<2xf32>
    %115 = vector.shape_cast %114 : vector<2xf32> to vector<2x1xf32>
    %116 = tpu.reciprocal %115 : vector<2x1xf32> -> vector<2x1xf32>
    %117 = vector.broadcast %116 : vector<2x1xf32> to vector<2x128xf32>
    %118 = arith.mulf %113, %117 : vector<2x128xf32>
    %c0_71 = arith.constant 0 : index
    %c0_72 = arith.constant 0 : index
    %c0_73 = arith.constant 0 : index
    %119 = vector.load %arg14[%c0_71, %c0_72, %c0_73] : memref<1x2x128xf32, #tpu.memory_space<vmem>>, vector<1x2x128xf32>
    %120 = vector.shape_cast %119 : vector<1x2x128xf32> to vector<2x128xf32>
    %121 = vector.shape_cast %118 : vector<2x128xf32> to vector<1x2x128xf32>
    tpu.vector_store %arg14[%c0_71, %c0_72, %c0_73], %121 {strides = array<i32>} : memref<1x2x128xf32, #tpu.memory_space<vmem>>, vector<1x2x128xf32>,
    %c0_74 = arith.constant 0 : index
    %c0_75 = arith.constant 0 : index
    %122 = vector.load %arg16[%c0_74, %c0_75] : memref<2x32xf32, #tpu.memory_space<vmem>>, vector<2x32xf32>
    tpu.vector_store %arg16[%c0_74, %c0_75], %74 {strides = array<i32>} : memref<2x32xf32, #tpu.memory_space<vmem>>, vector<2x32xf32>,
    %c0_i32_76 = arith.constant 0 : i32
    %123 = arith.cmpi eq, %arg0, %c0_i32_76 : i32
    %124 = arith.extui %123 : i1 to i32
    %c0_i32_77 = arith.constant 0 : i32
    %125 = arith.cmpi ne, %124, %c0_i32_77 : i32
    scf.if %125 {
      %c0_78 = arith.constant 0 : index
      %c0_79 = arith.constant 0 : index
      %126 = vector.load %arg15[%c0_78, %c0_79] : memref<2x32xf32, #tpu.memory_space<vmem>>, vector<2x32xf32>
      tpu.vector_store %arg15[%c0_78, %c0_79], %74 {strides = array<i32>} : memref<2x32xf32, #tpu.memory_space<vmem>>, vector<2x32xf32>,
    } else {
    }
    return
  }
  func.func @transform_0(%arg0: i32, %arg1: memref<1x2xi32, #tpu.memory_space<smem>>) -> (i32, i32) {
    %c0_i32 = arith.constant 0 : i32
    %c0_i32_0 = arith.constant 0 : i32
    %c0_i32_1 = arith.constant 0 : i32
    return %c0_i32, %c0_i32_0 : i32, i32
  }
  func.func @transform_1(%arg0: i32, %arg1: memref<1x2xi32, #tpu.memory_space<smem>>) -> (i32, i32, i32) {
    %c0_i32 = arith.constant 0 : i32
    %c0_i32_0 = arith.constant 0 : i32
    %c0_i32_1 = arith.constant 0 : i32
    %c0_i32_2 = arith.constant 0 : i32
    return %c0_i32, %c0_i32_0, %c0_i32_1 : i32, i32, i32
  }
  func.func @transform_2(%arg0: i32, %arg1: memref<1x2xi32, #tpu.memory_space<smem>>) -> (i32, i32) {
    %c0_i32 = arith.constant 0 : i32
    %c0_i32_0 = arith.constant 0 : i32
    %c0_i32_1 = arith.constant 0 : i32
    return %c0_i32, %c0_i32_0 : i32, i32
  }
  func.func @transform_3(%arg0: i32, %arg1: memref<1x2xi32, #tpu.memory_space<smem>>) -> (i32, i32, i32) {
    %c0_i32 = arith.constant 0 : i32
    %c0_i32_0 = arith.constant 0 : i32
    %c0_i32_1 = arith.constant 0 : i32
    %c0_i32_2 = arith.constant 0 : i32
    return %c0_i32, %c0_i32_0, %c0_i32_1 : i32, i32, i32
  }
  func.func @transform_4(%arg0: i32, %arg1: memref<1x2xi32, #tpu.memory_space<smem>>) -> (i32, i32, i32) {
    %c0_i32 = arith.constant 0 : i32
    %c0_i32_0 = arith.constant 0 : i32
    %c0_i32_1 = arith.constant 0 : i32
    %c0_i32_2 = arith.constant 0 : i32
    return %c0_i32, %c0_i32_0, %c0_i32_1 : i32, i32, i32
  }
  func.func @transform_5(%arg0: i32, %arg1: memref<1x2xi32, #tpu.memory_space<smem>>) -> (i32, i32, i32) {
    %c0_i32 = arith.constant 0 : i32
    %c0_i32_0 = arith.constant 0 : i32
    %c0_i32_1 = arith.constant 0 : i32
    %c0_i32_2 = arith.constant 0 : i32
    return %c0_i32, %c0_i32_0, %c0_i32_1 : i32, i32, i32
  }
  func.func @transform_6(%arg0: i32, %arg1: memref<1x2xi32, #tpu.memory_space<smem>>) -> (i32, i32, i32) {
    %c0_i32 = arith.constant 0 : i32
    %c0_i32_0 = arith.constant 0 : i32
    %c0_i32_1 = arith.constant 0 : i32
    %c0_i32_2 = arith.constant 0 : i32
    return %c0_i32, %c0_i32_0, %c0_i32_1 : i32, i32, i32
  }
  func.func @transform_7(%arg0: i32, %arg1: memref<1x2xi32, #tpu.memory_space<smem>>) -> (i32, i32) {
    %c0_i32 = arith.constant 0 : i32
    %c0_i32_0 = arith.constant 0 : i32
    %c0_i32_1 = arith.constant 0 : i32
    return %c0_i32, %c0_i32_0 : i32, i32
  }
  func.func @transform_8(%arg0: i32, %arg1: memref<1x2xi32, #tpu.memory_space<smem>>) -> (i32, i32) {
    %c0_i32 = arith.constant 0 : i32
    %c0_i32_0 = arith.constant 0 : i32
    %c0_i32_1 = arith.constant 0 : i32
    return %c0_i32, %c0_i32_0 : i32, i32
  }
  func.func @transform_9(%arg0: i32, %arg1: memref<1x2xi32, #tpu.memory_space<smem>>) -> (i32, i32) {
    %c0_i32 = arith.constant 0 : i32
    %c0_i32_0 = arith.constant 0 : i32
    %c0_i32_1 = arith.constant 0 : i32
    return %c0_i32, %c0_i32_0 : i32, i32
  }
  func.func @transform_10(%arg0: i32, %arg1: memref<1x2xi32, #tpu.memory_space<smem>>) -> (i32, i32) {
    %c0_i32 = arith.constant 0 : i32
    %c0_i32_0 = arith.constant 0 : i32
    %c0_i32_1 = arith.constant 0 : i32
    return %c0_i32, %c0_i32_0 : i32, i32
  }
  func.func @transform_11(%arg0: i32, %arg1: memref<1x2xi32, #tpu.memory_space<smem>>) -> (i32, i32) {
    %c0_i32 = arith.constant 0 : i32
    %c0_i32_0 = arith.constant 0 : i32
    %c0_i32_1 = arith.constant 0 : i32
    return %c0_i32, %c0_i32_0 : i32, i32
  }
  func.func @transform_12(%arg0: i32, %arg1: memref<1x2xi32, #tpu.memory_space<smem>>) -> (i32, i32, i32) {
    %c0_i32 = arith.constant 0 : i32
    %c0_i32_0 = arith.constant 0 : i32
    %c0_i32_1 = arith.constant 0 : i32
    return %arg0, %c0_i32, %c0_i32_0 : i32, i32, i32
  }
  func.func @transform_13(%arg0: i32, %arg1: memref<1x2xi32, #tpu.memory_space<smem>>) -> (i32, i32) {
    %c0_i32 = arith.constant 0 : i32
    %c0_i32_0 = arith.constant 0 : i32
    %c0_i32_1 = arith.constant 0 : i32
    return %c0_i32, %c0_i32_0 : i32, i32
  }
}

</mosaic_0001>

<llo_original>
// kernel: luong_attn_decode.1
$region0: #{luong_attn_decode.1}
  #allocation0 [shape = 'u32[]', space=smem, size = 0x4, offset = 0x4, fixed_abs, tag = 'smem constant byte address 0x4 - core index']
  #allocation1 [shape = 'u32[144,128]{1,0:T(1,128)}', space=vmem, size = 0x12000, scoped, tag = 'internal scratch']
  #allocation2 [shape = 'f32[2,32]{1,0:T(2,128)}', space=vmem, size = 0x400, scoped, tag = 'scratch operand']
  #allocation3 [shape = 's32[1]{0}', space=sflag, size = 0x4, scoped, tag = 'scoped memory for luong_attn_decode.1']
  #allocation4 [shape = 'u8[512]{0}', space=smem, size = 0x200, scoped, tag = 'prefetched SMEM operand 0']
  %s0 = inlined_call_operand.vmem [shape: s32[1,2], index: 0, kind: input, shape index: {}]
  %s1 = inlined_call_operand.vmem [shape: f32[2,32], index: 1, kind: input, shape index: {}]
  %s2 = inlined_call_operand.vmem [shape: f32[2,8,32], index: 2, kind: input, shape index: {}]
  %s3 = inlined_call_operand.vmem [shape: f32[20,32], index: 3, kind: input, shape index: {}]
  %s4 = inlined_call_operand.vmem [shape: f32[3,32,32], index: 4, kind: input, shape index: {}]
  %s5 = inlined_call_operand.vmem [shape: f32[3,32,32], index: 5, kind: input, shape index: {}]
  %s6 = inlined_call_operand.vmem [shape: f32[3,1,32], index: 6, kind: input, shape index: {}]
  %s7 = inlined_call_operand.vmem [shape: f32[3,1,32], index: 7, kind: input, shape index: {}]
  %s8 = inlined_call_operand.vmem [shape: f32[32,32], index: 8, kind: input, shape index: {}]
  %s9 = inlined_call_operand.vmem [shape: f32[32,32], index: 9, kind: input, shape index: {}]
  %s10 = inlined_call_operand.vmem [shape: f32[1,32], index: 10, kind: input, shape index: {}]
  %s11 = inlined_call_operand.vmem [shape: f32[32,128], index: 11, kind: input, shape index: {}]
  %s12 = inlined_call_operand.vmem [shape: f32[1,128], index: 12, kind: input, shape index: {}]
  %s13 = inlined_call_operand.hbm [shape: f32[1,2,128], index: 13, kind: output, shape index: {0}]
  %s14 = inlined_call_operand.hbm [shape: f32[2,32], index: 14, kind: output, shape index: {1}]
  %15 = xla_tuple %s13, %s14
  %s16 = sld [smem:[#allocation0]]
  $region74: #{luong_attn_decode.1} parent=0
    _
  %s18 = ssub.s32 1, %s16
  %s19 = scalar_select 0, %s18, %s16
  %s20 = sshll.u32 %s0, 4
  %s21 = int_to_ptr.vmem [resolvable:$true] %s20
  %23 = dma.vmem_to_smem %s21, 16, [#allocation4], [#allocation3]
  %24 = dma.done [#allocation3], 16
  %25 = sfence
  $region1: #{luong_attn_decode.1} parent=0
    #allocation5 [shape = 'u8[1024]{0}', space=vmem, size = 0x400, scoped, tag = 'output window, operand 0, single buffered']
    #allocation6 [shape = 's32[1]{0}', space=sflag, size = 0x4, scoped, tag = 'scoped memory for luong_attn_decode.1']
    #allocation7 [shape = 'u8[1024]{0}', space=vmem, size = 0x400, scoped, tag = 'output window, operand 1, single buffered']
    #allocation8 [shape = 's32[1]{0}', space=sflag, size = 0x4, scoped, tag = 'scoped memory for luong_attn_decode.1']
    %26 = vsyncpa [#allocation6], 0
    %27 = vsyncpa [#allocation8], 0
    // Predicated region
    $region2: #{luong_attn_decode.1} parent=1 // pred_check
      _
    $region3: #{luong_attn_decode.1} parent=1 // pred_check_branch
      %29 = sbr.rel (0) target = $region5
    $region4: #{luong_attn_decode.1} parent=1 // pred_region
      _
    $region5: #{luong_attn_decode.1} parent=1 // pred_fallthru
      _
    // Predicated region
    $region6: #{luong_attn_decode.1} parent=1 // pred_check
      _
    $region7: #{luong_attn_decode.1} parent=1 // pred_check_branch
      %31 = sbr.rel (0) target = $region9
    $region8: #{luong_attn_decode.1} parent=1 // pred_region
      _
    $region9: #{luong_attn_decode.1} parent=1 // pred_fallthru
      _
    // Predicated region
    $region10: #{luong_attn_decode.1} parent=1 // pred_check
      _
    $region11: #{luong_attn_decode.1} parent=1 // pred_check_branch
      %33 = sbr.rel (0) target = $region13
    $region12: #{luong_attn_decode.1} parent=1 // pred_region
      _
    $region13: #{luong_attn_decode.1} parent=1 // pred_fallthru
      _
    // Predicated region
    $region14: #{luong_attn_decode.1} parent=1 // pred_check
      _
    $region15: #{luong_attn_decode.1} parent=1 // pred_check_branch
      %35 = sbr.rel (0) target = $region17
    $region16: #{luong_attn_decode.1} parent=1 // pred_region
      _
    $region17: #{luong_attn_decode.1} parent=1 // pred_fallthru
      _
    // Predicated region
    $region18: #{luong_attn_decode.1} parent=1 // pred_check
      _
    $region19: #{luong_attn_decode.1} parent=1 // pred_check_branch
      %37 = sbr.rel (0) target = $region21
    $region20: #{luong_attn_decode.1} parent=1 // pred_region
      _
    $region21: #{luong_attn_decode.1} parent=1 // pred_fallthru
      _
    // Predicated region
    $region22: #{luong_attn_decode.1} parent=1 // pred_check
      _
    $region23: #{luong_attn_decode.1} parent=1 // pred_check_branch
      %39 = sbr.rel (0) target = $region25
    $region24: #{luong_attn_decode.1} parent=1 // pred_region
      _
    $region25: #{luong_attn_decode.1} parent=1 // pred_fallthru
      _
    // Predicated region
    $region26: #{luong_attn_decode.1} parent=1 // pred_check
      _
    $region27: #{luong_attn_decode.1} parent=1 // pred_check_branch
      %41 = sbr.rel (0) target = $region29
    $region28: #{luong_attn_decode.1} parent=1 // pred_region
      _
    $region29: #{luong_attn_decode.1} parent=1 // pred_fallthru
      _
    // Predicated region
    $region30: #{luong_attn_decode.1} parent=1 // pred_check
      _
    $region31: #{luong_attn_decode.1} parent=1 // pred_check_branch
      %43 = sbr.rel (0) target = $region33
    $region32: #{luong_attn_decode.1} parent=1 // pred_region
      _
    $region33: #{luong_attn_decode.1} parent=1 // pred_fallthru
      _
    // Predicated region
    $region34: #{luong_attn_decode.1} parent=1 // pred_check
      _
    $region35: #{luong_attn_decode.1} parent=1 // pred_check_branch
      %45 = sbr.rel (0) target = $region37
    $region36: #{luong_attn_decode.1} parent=1 // pred_region
      _
    $region37: #{luong_attn_decode.1} parent=1 // pred_fallthru
      _
    // Predicated region
    $region38: #{luong_attn_decode.1} parent=1 // pred_check
      _
    $region39: #{luong_attn_decode.1} parent=1 // pred_check_branch
      %47 = sbr.rel (0) target = $region41
    $region40: #{luong_attn_decode.1} parent=1 // pred_region
      _
    $region41: #{luong_attn_decode.1} parent=1 // pred_fallthru
      _
    // Predicated region
    $region42: #{luong_attn_decode.1} parent=1 // pred_check
      _
    $region43: #{luong_attn_decode.1} parent=1 // pred_check_branch
      %49 = sbr.rel (0) target = $region45
    $region44: #{luong_attn_decode.1} parent=1 // pred_region
      _
    $region45: #{luong_attn_decode.1} parent=1 // pred_fallthru
      _
    // Predicated region
    $region46: #{luong_attn_decode.1} parent=1 // pred_check
      _
    $region47: #{luong_attn_decode.1} parent=1 // pred_check_branch
      %51 = sbr.rel (0) target = $region49
    $region48: #{luong_attn_decode.1} parent=1 // pred_region
      _
    $region49: #{luong_attn_decode.1} parent=1 // pred_fallthru
      _
    %p52 = scmp.eq.s32.totalorder 0, 0
    // Predicated region
    $region50: #{luong_attn_decode.1} parent=1 // pred_check
      %p53 = pneg %p52
    $region51: #{luong_attn_decode.1} parent=1 // pred_check_branch
      %55 = sbr.rel (%p53) target = $region53
    $region52: #{luong_attn_decode.1} parent=1 // pred_region
      %v56 = vld [vmem:[%s1] sm:$0x3]
      %vm57 = vcmask 254976
      %58 = vst.msk [vmem:[#allocation2] sm:$0x3] %vm57, %v56
    $region53: #{luong_attn_decode.1} parent=1 // pred_fallthru
      _
    %s59 = smul.u32 0, 128
    %s60 = sld [smem:[#allocation4 + %s59]]
    %s61 = scalar_lea.vmem %s3, %s60
    %v62 = vld [vmem:[%s61] sm:$0x1]
    %s63 = sadd.s32 %s59, 1
    %s64 = sld [smem:[#allocation4 + %s63]]
    %s65 = scalar_lea.vmem %s3, %s64
    %v66 = vld [vmem:[%s65] sm:$0x1]
    %v68 = vrot.slane %v66, 7
    %vm70 = vcmask 1040384
    %v71 = vsel %vm70, %v62, %v68
    %v72 = vld [vmem:[#allocation2] sm:$0x3]
    %v73 = vld [vmem:[%s4] sm:$0xff]
    %v74 = vld [vmem:[%s4 + $0x8] sm:$0xff]
    %v75 = vld [vmem:[%s4 + $0x10] sm:$0xff]
    %v76 = vld [vmem:[%s4 + $0x18] sm:$0xff]
    %v77 = vld [vmem:[%s6] sm:$0x1]
    %v79 = vlaneseq
    %v80 = vshrl.u32 %v79, 7
    %v81 = vsub.s32 0, %v80
    %v82 = vrot.slane %v77, %v81
    %vm84 = vcmask 261120
    %v86 = vsel %vm84, %v71, 0
    %88 = vmatprep.subr.mxu0 0.0
    %89 = vmatpush1.msra.mxu0 %v73
    %90 = vmatprep.subr.mxu0 0.0
    %91 = vmatpush1.msra.mxu0 %v74
    %92 = vmatprep.subr.mxu0 0.0
    %93 = vmatpush1.msra.mxu0 %v75
    %94 = vmatprep.subr.mxu0 0.0
    %95 = vmatpush1.msra.mxu0 %v76
    %96 = vmatprep.subr.mxu0 0.0
    %97 = vmatpush1.msra.mxu0 0.0
    %98 = vmatprep.subr.mxu0 0.0
    %99 = vmatpush1.msra.mxu0 0.0
    %100 = vmatprep.subr.mxu0 0.0
    %101 = vmatpush1.msra.mxu0 0.0
    %102 = vmatprep.subr.mxu0 0.0
    %103 = vmatpush1.msra.mxu0 0.0
    %104 = vmatprep.subr.mxu0 0.0
    %105 = vmatpush1.msra.mxu0 0.0
    %106 = vmatprep.subr.mxu0 0.0
    %107 = vmatpush1.msra.mxu0 0.0
    %108 = vmatprep.subr.mxu0 0.0
    %109 = vmatpush1.msra.mxu0 0.0
    %110 = vmatprep.subr.mxu0 0.0
    %111 = vmatpush1.msra.mxu0 0.0
    %112 = vmatprep.subr.mxu0 0.0
    %113 = vmatpush1.msra.mxu0 0.0
    %114 = vmatprep.subr.mxu0 0.0
    %115 = vmatpush1.msra.mxu0 0.0
    %116 = vmatprep.subr.mxu0 0.0
    %117 = vmatpush1.msra.mxu0 0.0
    %118 = vmatprep.subr.mxu0 0.0
    %119 = vmatpush1.msra.mxu0 0.0
    %120 = vmatprep.subr.mxu0 0.0
    %121 = vmatpush1.msra.mxu0 0.0
    %122 = vmatprep.subr.mxu0 0.0
    %123 = vmatpush1.msra.mxu0 0.0
    %124 = vmatprep.subr.mxu0 0.0
    %125 = vmatpush1.msra.mxu0 0.0
    %126 = vmatprep.subr.mxu0 0.0
    %127 = vmatpush1.msra.mxu0 0.0
    %128 = vmatprep.subr.mxu0 0.0
    %129 = vmatpush1.msra.mxu0 0.0
    %130 = vmatprep.subr.mxu0 0.0
    %131 = vmatpush1.msra.mxu0 0.0
    %132 = vmatprep.subr.mxu0 0.0
    %133 = vmatpush1.msra.mxu0 0.0
    %134 = vmatprep.subr.mxu0 0.0
    %135 = vmatpush1.msra.mxu0 0.0
    %136 = vmatprep.subr.mxu0 0.0
    %137 = vmatpush1.msra.mxu0 0.0
    %138 = vmatprep.subr.mxu0 0.0
    %139 = vmatpush1.msra.mxu0 0.0
    %140 = vmatprep.subr.mxu0 0.0
    %141 = vmatpush1.msra.mxu0 0.0
    %142 = vmatprep.subr.mxu0 0.0
    %143 = vmatpush1.msra.mxu0 0.0
    %144 = vmatprep.subr.mxu0 0.0
    %145 = vmatpush1.msra.mxu0 0.0
    %146 = vmatprep.subr.mxu0 0.0
    %147 = vmatpush1.msra.mxu0 0.0
    %148 = vmatprep.subr.mxu0 0.0
    %149 = vmatpush1.msra.mxu0 0.0
    %150 = vmatprep.subr.mxu0 0.0
    %151 = vmatpush1.msra.mxu0 0.0
    %152 = vmatprep.mubr.f32.mxu0 0.0
    %153 = vmatmul.mubr.f32.gmra.mrb[0].mxu0 %v86
    %v154 = vpop.f32.mrb[0].mxu0
    %v155 = vadd.f32 %v82, %v154
    %v156 = vpop.f32.mrb[0].mxu0
    %157 = vdwg.mxu0
    %s158 = scalar_lea.vmem %s4, 32
    %v159 = vld [vmem:[%s158] sm:$0xff]
    %v160 = vld [vmem:[%s158 + $0x8] sm:$0xff]
    %v161 = vld [vmem:[%s158 + $0x10] sm:$0xff]
    %v162 = vld [vmem:[%s158 + $0x18] sm:$0xff]
    %s163 = scalar_lea.vmem %s6, 1
    %v164 = vld [vmem:[%s163] sm:$0x1]
    %v166 = vlaneseq
    %v167 = vshrl.u32 %v166, 7
    %v168 = vsub.s32 0, %v167
    %v169 = vrot.slane %v164, %v168
    %171 = vmatprep.subr.mxu0 0.0
    %172 = vmatpush1.msra.mxu0 %v159
    %173 = vmatprep.subr.mxu0 0.0
    %174 = vmatpush1.msra.mxu0 %v160
    %175 = vmatprep.subr.mxu0 0.0
    %176 = vmatpush1.msra.mxu0 %v161
    %177 = vmatprep.subr.mxu0 0.0
    %178 = vmatpush1.msra.mxu0 %v162
    %179 = vmatprep.subr.mxu0 0.0
    %180 = vmatpush1.msra.mxu0 0.0
    %181 = vmatprep.subr.mxu0 0.0
    %182 = vmatpush1.msra.mxu0 0.0
    %183 = vmatprep.subr.mxu0 0.0
    %184 = vmatpush1.msra.mxu0 0.0
    %185 = vmatprep.subr.mxu0 0.0
    %186 = vmatpush1.msra.mxu0 0.0
    %187 = vmatprep.subr.mxu0 0.0
    %188 = vmatpush1.msra.mxu0 0.0
    %189 = vmatprep.subr.mxu0 0.0
    %190 = vmatpush1.msra.mxu0 0.0
    %191 = vmatprep.subr.mxu0 0.0
    %192 = vmatpush1.msra.mxu0 0.0
    %193 = vmatprep.subr.mxu0 0.0
    %194 = vmatpush1.msra.mxu0 0.0
    %195 = vmatprep.subr.mxu0 0.0
    %196 = vmatpush1.msra.mxu0 0.0
    %197 = vmatprep.subr.mxu0 0.0
    %198 = vmatpush1.msra.mxu0 0.0
    %199 = vmatprep.subr.mxu0 0.0
    %200 = vmatpush1.msra.mxu0 0.0
    %201 = vmatprep.subr.mxu0 0.0
    %202 = vmatpush1.msra.mxu0 0.0
    %203 = vmatprep.subr.mxu0 0.0
    %204 = vmatpush1.msra.mxu0 0.0
    %205 = vmatprep.subr.mxu0 0.0
    %206 = vmatpush1.msra.mxu0 0.0
    %207 = vmatprep.subr.mxu0 0.0
    %208 = vmatpush1.msra.mxu0 0.0
    %209 = vmatprep.subr.mxu0 0.0
    %210 = vmatpush1.msra.mxu0 0.0
    %211 = vmatprep.subr.mxu0 0.0
    %212 = vmatpush1.msra.mxu0 0.0
    %213 = vmatprep.subr.mxu0 0.0
    %214 = vmatpush1.msra.mxu0 0.0
    %215 = vmatprep.subr.mxu0 0.0
    %216 = vmatpush1.msra.mxu0 0.0
    %217 = vmatprep.subr.mxu0 0.0
    %218 = vmatpush1.msra.mxu0 0.0
    %219 = vmatprep.subr.mxu0 0.0
    %220 = vmatpush1.msra.mxu0 0.0
    %221 = vmatprep.subr.mxu0 0.0
    %222 = vmatpush1.msra.mxu0 0.0
    %223 = vmatprep.subr.mxu0 0.0
    %224 = vmatpush1.msra.mxu0 0.0
    %225 = vmatprep.subr.mxu0 0.0
    %226 = vmatpush1.msra.mxu0 0.0
    %227 = vmatprep.subr.mxu0 0.0
    %228 = vmatpush1.msra.mxu0 0.0
    %229 = vmatprep.subr.mxu0 0.0
    %230 = vmatpush1.msra.mxu0 0.0
    %231 = vmatprep.subr.mxu0 0.0
    %232 = vmatpush1.msra.mxu0 0.0
    %233 = vmatprep.subr.mxu0 0.0
    %234 = vmatpush1.msra.mxu0 0.0
    %235 = vmatprep.mubr.f32.mxu0 0.0
    %236 = vmatmul.mubr.f32.gmra.mrb[0].mxu0 %v86
    %v237 = vpop.f32.mrb[0].mxu0
    %v238 = vadd.f32 %v169, %v237
    %v239 = vpop.f32.mrb[0].mxu0
    %240 = vdwg.mxu0
    %s241 = scalar_lea.vmem %s4, 64
    %v242 = vld [vmem:[%s241] sm:$0xff]
    %v243 = vld [vmem:[%s241 + $0x8] sm:$0xff]
    %v244 = vld [vmem:[%s241 + $0x10] sm:$0xff]
    %v245 = vld [vmem:[%s241 + $0x18] sm:$0xff]
    %s246 = scalar_lea.vmem %s6, 2
    %v247 = vld [vmem:[%s246] sm:$0x1]
    %v249 = vlaneseq
    %v250 = vshrl.u32 %v249, 7
    %v251 = vsub.s32 0, %v250
    %v252 = vrot.slane %v247, %v251
    %254 = vmatprep.subr.mxu0 0.0
    %255 = vmatpush1.msra.mxu0 %v242
    %256 = vmatprep.subr.mxu0 0.0
    %257 = vmatpush1.msra.mxu0 %v243
    %258 = vmatprep.subr.mxu0 0.0
    %259 = vmatpush1.msra.mxu0 %v244
    %260 = vmatprep.subr.mxu0 0.0
    %261 = vmatpush1.msra.mxu0 %v245
    %262 = vmatprep.subr.mxu0 0.0
    %263 = vmatpush1.msra.mxu0 0.0
    %264 = vmatprep.subr.mxu0 0.0
    %265 = vmatpush1.msra.mxu0 0.0
    %266 = vmatprep.subr.mxu0 0.0
    %267 = vmatpush1.msra.mxu0 0.0
    %268 = vmatprep.subr.mxu0 0.0
    %269 = vmatpush1.msra.mxu0 0.0
    %270 = vmatprep.subr.mxu0 0.0
    %271 = vmatpush1.msra.mxu0 0.0
    %272 = vmatprep.subr.mxu0 0.0
    %273 = vmatpush1.msra.mxu0 0.0
    %274 = vmatprep.subr.mxu0 0.0
    %275 = vmatpush1.msra.mxu0 0.0
    %276 = vmatprep.subr.mxu0 0.0
    %277 = vmatpush1.msra.mxu0 0.0
    %278 = vmatprep.subr.mxu0 0.0
    %279 = vmatpush1.msra.mxu0 0.0
    %280 = vmatprep.subr.mxu0 0.0
    %281 = vmatpush1.msra.mxu0 0.0
    %282 = vmatprep.subr.mxu0 0.0
    %283 = vmatpush1.msra.mxu0 0.0
    %284 = vmatprep.subr.mxu0 0.0
    %285 = vmatpush1.msra.mxu0 0.0
    %286 = vmatprep.subr.mxu0 0.0
    %287 = vmatpush1.msra.mxu0 0.0
    %288 = vmatprep.subr.mxu0 0.0
    %289 = vmatpush1.msra.mxu0 0.0
    %290 = vmatprep.subr.mxu0 0.0
    %291 = vmatpush1.msra.mxu0 0.0
    %292 = vmatprep.subr.mxu0 0.0
    %293 = vmatpush1.msra.mxu0 0.0
    %294 = vmatprep.subr.mxu0 0.0
    %295 = vmatpush1.msra.mxu0 0.0
    %296 = vmatprep.subr.mxu0 0.0
    %297 = vmatpush1.msra.mxu0 0.0
    %298 = vmatprep.subr.mxu0 0.0
    %299 = vmatpush1.msra.mxu0 0.0
    %300 = vmatprep.subr.mxu0 0.0
    %301 = vmatpush1.msra.mxu0 0.0
    %302 = vmatprep.subr.mxu0 0.0
    %303 = vmatpush1.msra.mxu0 0.0
    %304 = vmatprep.subr.mxu0 0.0
    %305 = vmatpush1.msra.mxu0 0.0
    %306 = vmatprep.subr.mxu0 0.0
    %307 = vmatpush1.msra.mxu0 0.0
    %308 = vmatprep.subr.mxu0 0.0
    %309 = vmatpush1.msra.mxu0 0.0
    %310 = vmatprep.subr.mxu0 0.0
    %311 = vmatpush1.msra.mxu0 0.0
    %312 = vmatprep.subr.mxu0 0.0
    %313 = vmatpush1.msra.mxu0 0.0
    %314 = vmatprep.subr.mxu0 0.0
    %315 = vmatpush1.msra.mxu0 0.0
    %316 = vmatprep.subr.mxu0 0.0
    %317 = vmatpush1.msra.mxu0 0.0
    %318 = vmatprep.mubr.f32.mxu0 0.0
    %319 = vmatmul.mubr.f32.gmra.mrb[0].mxu0 %v86
    %v320 = vpop.f32.mrb[0].mxu0
    %v321 = vadd.f32 %v252, %v320
    %v322 = vpop.f32.mrb[0].mxu0
    %323 = vdwg.mxu0
    %v324 = vld [vmem:[%s5] sm:$0xff]
    %v325 = vld [vmem:[%s5 + $0x8] sm:$0xff]
    %v326 = vld [vmem:[%s5 + $0x10] sm:$0xff]
    %v327 = vld [vmem:[%s5 + $0x18] sm:$0xff]
    %v328 = vld [vmem:[%s7] sm:$0x1]
    %v330 = vlaneseq
    %v331 = vshrl.u32 %v330, 7
    %v332 = vsub.s32 0, %v331
    %v333 = vrot.slane %v328, %v332
    %v336 = vsel %vm84, %v72, 0
    %338 = vmatprep.subr.mxu0 0.0
    %339 = vmatpush1.msra.mxu0 %v324
    %340 = vmatprep.subr.mxu0 0.0
    %341 = vmatpush1.msra.mxu0 %v325
    %342 = vmatprep.subr.mxu0 0.0
    %343 = vmatpush1.msra.mxu0 %v326
    %344 = vmatprep.subr.mxu0 0.0
    %345 = vmatpush1.msra.mxu0 %v327
    %346 = vmatprep.subr.mxu0 0.0
    %347 = vmatpush1.msra.mxu0 0.0
    %348 = vmatprep.subr.mxu0 0.0
    %349 = vmatpush1.msra.mxu0 0.0
    %350 = vmatprep.subr.mxu0 0.0
    %351 = vmatpush1.msra.mxu0 0.0
    %352 = vmatprep.subr.mxu0 0.0
    %353 = vmatpush1.msra.mxu0 0.0
    %354 = vmatprep.subr.mxu0 0.0
    %355 = vmatpush1.msra.mxu0 0.0
    %356 = vmatprep.subr.mxu0 0.0
    %357 = vmatpush1.msra.mxu0 0.0
    %358 = vmatprep.subr.mxu0 0.0
    %359 = vmatpush1.msra.mxu0 0.0
    %360 = vmatprep.subr.mxu0 0.0
    %361 = vmatpush1.msra.mxu0 0.0
    %362 = vmatprep.subr.mxu0 0.0
    %363 = vmatpush1.msra.mxu0 0.0
    %364 = vmatprep.subr.mxu0 0.0
    %365 = vmatpush1.msra.mxu0 0.0
    %366 = vmatprep.subr.mxu0 0.0
    %367 = vmatpush1.msra.mxu0 0.0
    %368 = vmatprep.subr.mxu0 0.0
    %369 = vmatpush1.msra.mxu0 0.0
    %370 = vmatprep.subr.mxu0 0.0
    %371 = vmatpush1.msra.mxu0 0.0
    %372 = vmatprep.subr.mxu0 0.0
    %373 = vmatpush1.msra.mxu0 0.0
    %374 = vmatprep.subr.mxu0 0.0
    %375 = vmatpush1.msra.mxu0 0.0
    %376 = vmatprep.subr.mxu0 0.0
    %377 = vmatpush1.msra.mxu0 0.0
    %378 = vmatprep.subr.mxu0 0.0
    %379 = vmatpush1.msra.mxu0 0.0
    %380 = vmatprep.subr.mxu0 0.0
    %381 = vmatpush1.msra.mxu0 0.0
    %382 = vmatprep.subr.mxu0 0.0
    %383 = vmatpush1.msra.mxu0 0.0
    %384 = vmatprep.subr.mxu0 0.0
    %385 = vmatpush1.msra.mxu0 0.0
    %386 = vmatprep.subr.mxu0 0.0
    %387 = vmatpush1.msra.mxu0 0.0
    %388 = vmatprep.subr.mxu0 0.0
    %389 = vmatpush1.msra.mxu0 0.0
    %390 = vmatprep.subr.mxu0 0.0
    %391 = vmatpush1.msra.mxu0 0.0
    %392 = vmatprep.subr.mxu0 0.0
    %393 = vmatpush1.msra.mxu0 0.0
    %394 = vmatprep.subr.mxu0 0.0
    %395 = vmatpush1.msra.mxu0 0.0
    %396 = vmatprep.subr.mxu0 0.0
    %397 = vmatpush1.msra.mxu0 0.0
    %398 = vmatprep.subr.mxu0 0.0
    %399 = vmatpush1.msra.mxu0 0.0
    %400 = vmatprep.subr.mxu0 0.0
    %401 = vmatpush1.msra.mxu0 0.0
    %402 = vmatprep.mubr.f32.mxu0 0.0
    %403 = vmatmul.mubr.f32.gmra.mrb[0].mxu0 %v336
    %v404 = vpop.f32.mrb[0].mxu0
    %v405 = vadd.f32 %v333, %v404
    %v406 = vpop.f32.mrb[0].mxu0
    %407 = vdwg.mxu0
    %s408 = scalar_lea.vmem %s5, 32
    %v409 = vld [vmem:[%s408] sm:$0xff]
    %v410 = vld [vmem:[%s408 + $0x8] sm:$0xff]
    %v411 = vld [vmem:[%s408 + $0x10] sm:$0xff]
    %v412 = vld [vmem:[%s408 + $0x18] sm:$0xff]
    %s413 = scalar_lea.vmem %s7, 1
    %v414 = vld [vmem:[%s413] sm:$0x1]
    %v416 = vlaneseq
    %v417 = vshrl.u32 %v416, 7
    %v418 = vsub.s32 0, %v417
    %v419 = vrot.slane %v414, %v418
    %421 = vmatprep.subr.mxu0 0.0
    %422 = vmatpush1.msra.mxu0 %v409
    %423 = vmatprep.subr.mxu0 0.0
    %424 = vmatpush1.msra.mxu0 %v410
    %425 = vmatprep.subr.mxu0 0.0
    %426 = vmatpush1.msra.mxu0 %v411
    %427 = vmatprep.subr.mxu0 0.0
    %428 = vmatpush1.msra.mxu0 %v412
    %429 = vmatprep.subr.mxu0 0.0
    %430 = vmatpush1.msra.mxu0 0.0
    %431 = vmatprep.subr.mxu0 0.0
    %432 = vmatpush1.msra.mxu0 0.0
    %433 = vmatprep.subr.mxu0 0.0
    %434 = vmatpush1.msra.mxu0 0.0
    %435 = vmatprep.subr.mxu0 0.0
    %436 = vmatpush1.msra.mxu0 0.0
    %437 = vmatprep.subr.mxu0 0.0
    %438 = vmatpush1.msra.mxu0 0.0
    %439 = vmatprep.subr.mxu0 0.0
    %440 = vmatpush1.msra.mxu0 0.0
    %441 = vmatprep.subr.mxu0 0.0
    %442 = vmatpush1.msra.mxu0 0.0
    %443 = vmatprep.subr.mxu0 0.0
    %444 = vmatpush1.msra.mxu0 0.0
    %445 = vmatprep.subr.mxu0 0.0
    %446 = vmatpush1.msra.mxu0 0.0
    %447 = vmatprep.subr.mxu0 0.0
    %448 = vmatpush1.msra.mxu0 0.0
    %449 = vmatprep.subr.mxu0 0.0
    %450 = vmatpush1.msra.mxu0 0.0
    %451 = vmatprep.subr.mxu0 0.0
    %452 = vmatpush1.msra.mxu0 0.0
    %453 = vmatprep.subr.mxu0 0.0
    %454 = vmatpush1.msra.mxu0 0.0
    %455 = vmatprep.subr.mxu0 0.0
    %456 = vmatpush1.msra.mxu0 0.0
    %457 = vmatprep.subr.mxu0 0.0
    %458 = vmatpush1.msra.mxu0 0.0
    %459 = vmatprep.subr.mxu0 0.0
    %460 = vmatpush1.msra.mxu0 0.0
    %461 = vmatprep.subr.mxu0 0.0
    %462 = vmatpush1.msra.mxu0 0.0
    %463 = vmatprep.subr.mxu0 0.0
    %464 = vmatpush1.msra.mxu0 0.0
    %465 = vmatprep.subr.mxu0 0.0
    %466 = vmatpush1.msra.mxu0 0.0
    %467 = vmatprep.subr.mxu0 0.0
    %468 = vmatpush1.msra.mxu0 0.0
    %469 = vmatprep.subr.mxu0 0.0
    %470 = vmatpush1.msra.mxu0 0.0
    %471 = vmatprep.subr.mxu0 0.0
    %472 = vmatpush1.msra.mxu0 0.0
    %473 = vmatprep.subr.mxu0 0.0
    %474 = vmatpush1.msra.mxu0 0.0
    %475 = vmatprep.subr.mxu0 0.0
    %476 = vmatpush1.msra.mxu0 0.0
    %477 = vmatprep.subr.mxu0 0.0
    %478 = vmatpush1.msra.mxu0 0.0
    %479 = vmatprep.subr.mxu0 0.0
    %480 = vmatpush1.msra.mxu0 0.0
    %481 = vmatprep.subr.mxu0 0.0
    %482 = vmatpush1.msra.mxu0 0.0
    %483 = vmatprep.subr.mxu0 0.0
    %484 = vmatpush1.msra.mxu0 0.0
    %485 = vmatprep.mubr.f32.mxu0 0.0
    %486 = vmatmul.mubr.f32.gmra.mrb[0].mxu0 %v336
    %v487 = vpop.f32.mrb[0].mxu0
    %v488 = vadd.f32 %v419, %v487
    %v489 = vpop.f32.mrb[0].mxu0
    %490 = vdwg.mxu0
    %s491 = scalar_lea.vmem %s5, 64
    %v492 = vld [vmem:[%s491] sm:$0xff]
    %v493 = vld [vmem:[%s491 + $0x8] sm:$0xff]
    %v494 = vld [vmem:[%s491 + $0x10] sm:$0xff]
    %v495 = vld [vmem:[%s491 + $0x18] sm:$0xff]
    %s496 = scalar_lea.vmem %s7, 2
    %v497 = vld [vmem:[%s496] sm:$0x1]
    %v499 = vlaneseq
    %v500 = vshrl.u32 %v499, 7
    %v501 = vsub.s32 0, %v500
    %v502 = vrot.slane %v497, %v501
    %504 = vmatprep.subr.mxu0 0.0
    %505 = vmatpush1.msra.mxu0 %v492
    %506 = vmatprep.subr.mxu0 0.0
    %507 = vmatpush1.msra.mxu0 %v493
    %508 = vmatprep.subr.mxu0 0.0
    %509 = vmatpush1.msra.mxu0 %v494
    %510 = vmatprep.subr.mxu0 0.0
    %511 = vmatpush1.msra.mxu0 %v495
    %512 = vmatprep.subr.mxu0 0.0
    %513 = vmatpush1.msra.mxu0 0.0
    %514 = vmatprep.subr.mxu0 0.0
    %515 = vmatpush1.msra.mxu0 0.0
    %516 = vmatprep.subr.mxu0 0.0
    %517 = vmatpush1.msra.mxu0 0.0
    %518 = vmatprep.subr.mxu0 0.0
    %519 = vmatpush1.msra.mxu0 0.0
    %520 = vmatprep.subr.mxu0 0.0
    %521 = vmatpush1.msra.mxu0 0.0
    %522 = vmatprep.subr.mxu0 0.0
    %523 = vmatpush1.msra.mxu0 0.0
    %524 = vmatprep.subr.mxu0 0.0
    %525 = vmatpush1.msra.mxu0 0.0
    %526 = vmatprep.subr.mxu0 0.0
    %527 = vmatpush1.msra.mxu0 0.0
    %528 = vmatprep.subr.mxu0 0.0
    %529 = vmatpush1.msra.mxu0 0.0
    %530 = vmatprep.subr.mxu0 0.0
    %531 = vmatpush1.msra.mxu0 0.0
    %532 = vmatprep.subr.mxu0 0.0
    %533 = vmatpush1.msra.mxu0 0.0
    %534 = vmatprep.subr.mxu0 0.0
    %535 = vmatpush1.msra.mxu0 0.0
    %536 = vmatprep.subr.mxu0 0.0
    %537 = vmatpush1.msra.mxu0 0.0
    %538 = vmatprep.subr.mxu0 0.0
    %539 = vmatpush1.msra.mxu0 0.0
    %540 = vmatprep.subr.mxu0 0.0
    %541 = vmatpush1.msra.mxu0 0.0
    %542 = vmatprep.subr.mxu0 0.0
    %543 = vmatpush1.msra.mxu0 0.0
    %544 = vmatprep.subr.mxu0 0.0
    %545 = vmatpush1.msra.mxu0 0.0
    %546 = vmatprep.subr.mxu0 0.0
    %547 = vmatpush1.msra.mxu0 0.0
    %548 = vmatprep.subr.mxu0 0.0
    %549 = vmatpush1.msra.mxu0 0.0
    %550 = vmatprep.subr.mxu0 0.0
    %551 = vmatpush1.msra.mxu0 0.0
    %552 = vmatprep.subr.mxu0 0.0
    %553 = vmatpush1.msra.mxu0 0.0
    %554 = vmatprep.subr.mxu0 0.0
    %555 = vmatpush1.msra.mxu0 0.0
    %556 = vmatprep.subr.mxu0 0.0
    %557 = vmatpush1.msra.mxu0 0.0
    %558 = vmatprep.subr.mxu0 0.0
    %559 = vmatpush1.msra.mxu0 0.0
    %560 = vmatprep.subr.mxu0 0.0
    %561 = vmatpush1.msra.mxu0 0.0
    %562 = vmatprep.subr.mxu0 0.0
    %563 = vmatpush1.msra.mxu0 0.0
    %564 = vmatprep.subr.mxu0 0.0
    %565 = vmatpush1.msra.mxu0 0.0
    %566 = vmatprep.subr.mxu0 0.0
    %567 = vmatpush1.msra.mxu0 0.0
    %568 = vmatprep.mubr.f32.mxu0 0.0
    %569 = vmatmul.mubr.f32.gmra.mrb[0].mxu0 %v336
    %v570 = vpop.f32.mrb[0].mxu0
    %v571 = vadd.f32 %v502, %v570
    %v572 = vpop.f32.mrb[0].mxu0
    %573 = vdwg.mxu0
    %v574 = vadd.f32 %v155, %v405
    %v575 = vxor.u32 %v574, 2147483648
    %v576 = vmul.f32 %v575, 1.442695
    %v577 = vpow.pop %v576
    %v578 = vadd.f32 %v577, 1.0
    %v579 = vrcp.pop %v578
    %v580 = vmul.f32 1.0, %v579
    %v581 = vadd.f32 %v238, %v488
    %v582 = vxor.u32 %v581, 2147483648
    %v583 = vmul.f32 %v582, 1.442695
    %v584 = vpow.pop %v583
    %v585 = vadd.f32 %v584, 1.0
    %v586 = vrcp.pop %v585
    %v587 = vmul.f32 1.0, %v586
    %v588 = vmul.f32 %v580, %v571
    %v589 = vadd.f32 %v321, %v588
    %v590 = vtanh.pop %v589
    %v591 = vsub.f32 1.0, %v587
    %v592 = vmul.f32 %v591, %v590
    %v593 = vmul.f32 %v587, %v72
    %v594 = vadd.f32 %v592, %v593
    %v595 = vld [vmem:[%s2] sm:$0xff]
    %v596 = vld [vmem:[%s2 + $0x8] sm:$0xff]
    %v599 = vunpack.c.l.s4 1966171168
    %v600 = vunpack.c.0.s8 %v599
    %v601 = vlaneseq
    %v602 = vshrl.u32 %v601, 7
    %v603 = vsub.s32 %v600, %v602
    %v604 = vrot.slane %v594, %v603
    %v605 = vcombine.high %v604, %v604
    %v607 = vunpack.c.l.s4 1966171168
    %v608 = vunpack.c.0.s8 %v607
    %v609 = vlaneseq
    %v610 = vshrl.u32 %v609, 7
    %v611 = vsub.s32 %v608, %v610
    %v612 = vrot.slane %v604, %v611
    %v614 = vunpack.c.l.s4 1966171168
    %v615 = vunpack.c.0.s8 %v614
    %v616 = vlaneseq
    %v617 = vshrl.u32 %v616, 7
    %v618 = vsub.s32 %v615, %v617
    %v619 = vrot.slane %v605, %v618
    %v620 = vsel %vm84, %v612, 0
    %v623 = vsel %vm84, %v595, 0
    %625 = vmatprep.subr.mxu0 0.0
    %626 = vmatpush1.xpose.msra.mxu0 %v623
    %627 = vmatprep.subr.mxu0 0.0
    %628 = vmatpush1.xpose.msra.mxu0 0.0
    %629 = vmatprep.subr.mxu0 0.0
    %630 = vmatpush1.xpose.msra.mxu0 0.0
    %631 = vmatprep.subr.mxu0 0.0
    %632 = vmatpush1.xpose.msra.mxu0 0.0
    %633 = vmatprep.subr.mxu0 0.0
    %634 = vmatpush1.xpose.msra.mxu0 0.0
    %635 = vmatprep.subr.mxu0 0.0
    %636 = vmatpush1.xpose.msra.mxu0 0.0
    %637 = vmatprep.subr.mxu0 0.0
    %638 = vmatpush1.xpose.msra.mxu0 0.0
    %639 = vmatprep.subr.mxu0 0.0
    %640 = vmatpush1.xpose.msra.mxu0 0.0
    %641 = vmatprep.subr.mxu0 0.0
    %642 = vmatpush1.xpose.msra.mxu0 0.0
    %643 = vmatprep.subr.mxu0 0.0
    %644 = vmatpush1.xpose.msra.mxu0 0.0
    %645 = vmatprep.subr.mxu0 0.0
    %646 = vmatpush1.xpose.msra.mxu0 0.0
    %647 = vmatprep.subr.mxu0 0.0
    %648 = vmatpush1.xpose.msra.mxu0 0.0
    %649 = vmatprep.subr.mxu0 0.0
    %650 = vmatpush1.xpose.msra.mxu0 0.0
    %651 = vmatprep.subr.mxu0 0.0
    %652 = vmatpush1.xpose.msra.mxu0 0.0
    %653 = vmatprep.subr.mxu0 0.0
    %654 = vmatpush1.xpose.msra.mxu0 0.0
    %655 = vmatprep.subr.mxu0 0.0
    %656 = vmatpush1.xpose.msra.mxu0 0.0
    %657 = vmatprep.subr.mxu0 0.0
    %658 = vmatpush1.xpose.msra.mxu0 0.0
    %659 = vmatprep.subr.mxu0 0.0
    %660 = vmatpush1.xpose.msra.mxu0 0.0
    %661 = vmatprep.subr.mxu0 0.0
    %662 = vmatpush1.xpose.msra.mxu0 0.0
    %663 = vmatprep.subr.mxu0 0.0
    %664 = vmatpush1.xpose.msra.mxu0 0.0
    %665 = vmatprep.subr.mxu0 0.0
    %666 = vmatpush1.xpose.msra.mxu0 0.0
    %667 = vmatprep.subr.mxu0 0.0
    %668 = vmatpush1.xpose.msra.mxu0 0.0
    %669 = vmatprep.subr.mxu0 0.0
    %670 = vmatpush1.xpose.msra.mxu0 0.0
    %671 = vmatprep.subr.mxu0 0.0
    %672 = vmatpush1.xpose.msra.mxu0 0.0
    %673 = vmatprep.subr.mxu0 0.0
    %674 = vmatpush1.xpose.msra.mxu0 0.0
    %675 = vmatprep.subr.mxu0 0.0
    %676 = vmatpush1.xpose.msra.mxu0 0.0
    %677 = vmatprep.subr.mxu0 0.0
    %678 = vmatpush1.xpose.msra.mxu0 0.0
    %679 = vmatprep.subr.mxu0 0.0
    %680 = vmatpush1.xpose.msra.mxu0 0.0
    %681 = vmatprep.subr.mxu0 0.0
    %682 = vmatpush1.xpose.msra.mxu0 0.0
    %683 = vmatprep.subr.mxu0 0.0
    %684 = vmatpush1.xpose.msra.mxu0 0.0
    %685 = vmatprep.subr.mxu0 0.0
    %686 = vmatpush1.xpose.msra.mxu0 0.0
    %687 = vmatprep.subr.mxu0 0.0
    %688 = vmatpush1.xpose.msra.mxu0 0.0
    %689 = vmatprep.mubr.f32.mxu0 0.0
    %690 = vmatmul.mubr.f32.gmra.mrb[0].mxu0 %v620
    %v691 = vpop.f32.mrb[0].mxu0
    %v692 = vadd.f32 0.0, %v691
    %v693 = vpop.f32.mrb[0].mxu0
    %694 = vdwg.mxu0
    %v695 = vsel %vm84, %v619, 0
    %v698 = vsel %vm84, %v596, 0
    %700 = vmatprep.subr.mxu0 0.0
    %701 = vmatpush1.xpose.msra.mxu0 %v698
    %702 = vmatprep.subr.mxu0 0.0
    %703 = vmatpush1.xpose.msra.mxu0 0.0
    %704 = vmatprep.subr.mxu0 0.0
    %705 = vmatpush1.xpose.msra.mxu0 0.0
    %706 = vmatprep.subr.mxu0 0.0
    %707 = vmatpush1.xpose.msra.mxu0 0.0
    %708 = vmatprep.subr.mxu0 0.0
    %709 = vmatpush1.xpose.msra.mxu0 0.0
    %710 = vmatprep.subr.mxu0 0.0
    %711 = vmatpush1.xpose.msra.mxu0 0.0
    %712 = vmatprep.subr.mxu0 0.0
    %713 = vmatpush1.xpose.msra.mxu0 0.0
    %714 = vmatprep.subr.mxu0 0.0
    %715 = vmatpush1.xpose.msra.mxu0 0.0
    %716 = vmatprep.subr.mxu0 0.0
    %717 = vmatpush1.xpose.msra.mxu0 0.0
    %718 = vmatprep.subr.mxu0 0.0
    %719 = vmatpush1.xpose.msra.mxu0 0.0
    %720 = vmatprep.subr.mxu0 0.0
    %721 = vmatpush1.xpose.msra.mxu0 0.0
    %722 = vmatprep.subr.mxu0 0.0
    %723 = vmatpush1.xpose.msra.mxu0 0.0
    %724 = vmatprep.subr.mxu0 0.0
    %725 = vmatpush1.xpose.msra.mxu0 0.0
    %726 = vmatprep.subr.mxu0 0.0
    %727 = vmatpush1.xpose.msra.mxu0 0.0
    %728 = vmatprep.subr.mxu0 0.0
    %729 = vmatpush1.xpose.msra.mxu0 0.0
    %730 = vmatprep.subr.mxu0 0.0
    %731 = vmatpush1.xpose.msra.mxu0 0.0
    %732 = vmatprep.subr.mxu0 0.0
    %733 = vmatpush1.xpose.msra.mxu0 0.0
    %734 = vmatprep.subr.mxu0 0.0
    %735 = vmatpush1.xpose.msra.mxu0 0.0
    %736 = vmatprep.subr.mxu0 0.0
    %737 = vmatpush1.xpose.msra.mxu0 0.0
    %738 = vmatprep.subr.mxu0 0.0
    %739 = vmatpush1.xpose.msra.mxu0 0.0
    %740 = vmatprep.subr.mxu0 0.0
    %741 = vmatpush1.xpose.msra.mxu0 0.0
    %742 = vmatprep.subr.mxu0 0.0
    %743 = vmatpush1.xpose.msra.mxu0 0.0
    %744 = vmatprep.subr.mxu0 0.0
    %745 = vmatpush1.xpose.msra.mxu0 0.0
    %746 = vmatprep.subr.mxu0 0.0
    %747 = vmatpush1.xpose.msra.mxu0 0.0
    %748 = vmatprep.subr.mxu0 0.0
    %749 = vmatpush1.xpose.msra.mxu0 0.0
    %750 = vmatprep.subr.mxu0 0.0
    %751 = vmatpush1.xpose.msra.mxu0 0.0
    %752 = vmatprep.subr.mxu0 0.0
    %753 = vmatpush1.xpose.msra.mxu0 0.0
    %754 = vmatprep.subr.mxu0 0.0
    %755 = vmatpush1.xpose.msra.mxu0 0.0
    %756 = vmatprep.subr.mxu0 0.0
    %757 = vmatpush1.xpose.msra.mxu0 0.0
    %758 = vmatprep.subr.mxu0 0.0
    %759 = vmatpush1.xpose.msra.mxu0 0.0
    %760 = vmatprep.subr.mxu0 0.0
    %761 = vmatpush1.xpose.msra.mxu0 0.0
    %762 = vmatprep.subr.mxu0 0.0
    %763 = vmatpush1.xpose.msra.mxu0 0.0
    %764 = vmatprep.mubr.f32.mxu0 0.0
    %765 = vmatmul.mubr.f32.gmra.mrb[0].mxu0 %v695
    %v766 = vpop.f32.mrb[0].mxu0
    %v767 = vadd.f32 0.0, %v766
    %v768 = vpop.f32.mrb[0].mxu0
    %769 = vdwg.mxu0
    %vm770 = vcmask 57344
    %v771 = vsel %vm770, %v692, -inf
    %772 = vmax.xlane.f32.xlu0 %v771
    %v773 = vpop.xlane.xlu0 %772
    %v774 = vsel %vm770, %v767, -inf
    %775 = vmax.xlane.f32.xlu0 %v774
    %v776 = vpop.xlane.xlu0 %775
    %v777 = vsub.f32 %v692, %v773
    %v778 = vsub.f32 %v767, %v776
    %v779 = vmul.f32 %v777, 1.442695
    %v780 = vpow.pop %v779
    %v781 = vmul.f32 %v778, 1.442695
    %v782 = vpow.pop %v781
    %v783 = vsel %vm770, %v780, 0.0
    %784 = vadd.xlane.f32.xlu0 %v783
    %v785 = vpop.xlane.xlu0 %784
    %v786 = vsel %vm770, %v782, 0.0
    %787 = vadd.xlane.f32.xlu0 %v786
    %v788 = vpop.xlane.xlu0 %787
    %v789 = vrcp.pop %v785
    %v790 = vrcp.pop %v788
    %v791 = vmul.f32 %v780, %v789
    %v792 = vmul.f32 %v782, %v790
    %vm793 = vcmask 64512
    %v795 = vsel %vm793, %v791, 0
    %797 = vmatprep.subr.mxu0 0.0
    %798 = vmatpush1.msra.mxu0 %v595
    %799 = vmatprep.subr.mxu0 0.0
    %800 = vmatpush1.msra.mxu0 0.0
    %801 = vmatprep.subr.mxu0 0.0
    %802 = vmatpush1.msra.mxu0 0.0
    %803 = vmatprep.subr.mxu0 0.0
    %804 = vmatpush1.msra.mxu0 0.0
    %805 = vmatprep.subr.mxu0 0.0
    %806 = vmatpush1.msra.mxu0 0.0
    %807 = vmatprep.subr.mxu0 0.0
    %808 = vmatpush1.msra.mxu0 0.0
    %809 = vmatprep.subr.mxu0 0.0
    %810 = vmatpush1.msra.mxu0 0.0
    %811 = vmatprep.subr.mxu0 0.0
    %812 = vmatpush1.msra.mxu0 0.0
    %813 = vmatprep.subr.mxu0 0.0
    %814 = vmatpush1.msra.mxu0 0.0
    %815 = vmatprep.subr.mxu0 0.0
    %816 = vmatpush1.msra.mxu0 0.0
    %817 = vmatprep.subr.mxu0 0.0
    %818 = vmatpush1.msra.mxu0 0.0
    %819 = vmatprep.subr.mxu0 0.0
    %820 = vmatpush1.msra.mxu0 0.0
    %821 = vmatprep.subr.mxu0 0.0
    %822 = vmatpush1.msra.mxu0 0.0
    %823 = vmatprep.subr.mxu0 0.0
    %824 = vmatpush1.msra.mxu0 0.0
    %825 = vmatprep.subr.mxu0 0.0
    %826 = vmatpush1.msra.mxu0 0.0
    %827 = vmatprep.subr.mxu0 0.0
    %828 = vmatpush1.msra.mxu0 0.0
    %829 = vmatprep.subr.mxu0 0.0
    %830 = vmatpush1.msra.mxu0 0.0
    %831 = vmatprep.subr.mxu0 0.0
    %832 = vmatpush1.msra.mxu0 0.0
    %833 = vmatprep.subr.mxu0 0.0
    %834 = vmatpush1.msra.mxu0 0.0
    %835 = vmatprep.subr.mxu0 0.0
    %836 = vmatpush1.msra.mxu0 0.0
    %837 = vmatprep.subr.mxu0 0.0
    %838 = vmatpush1.msra.mxu0 0.0
    %839 = vmatprep.subr.mxu0 0.0
    %840 = vmatpush1.msra.mxu0 0.0
    %841 = vmatprep.subr.mxu0 0.0
    %842 = vmatpush1.msra.mxu0 0.0
    %843 = vmatprep.subr.mxu0 0.0
    %844 = vmatpush1.msra.mxu0 0.0
    %845 = vmatprep.subr.mxu0 0.0
    %846 = vmatpush1.msra.mxu0 0.0
    %847 = vmatprep.subr.mxu0 0.0
    %848 = vmatpush1.msra.mxu0 0.0
    %849 = vmatprep.subr.mxu0 0.0
    %850 = vmatpush1.msra.mxu0 0.0
    %851 = vmatprep.subr.mxu0 0.0
    %852 = vmatpush1.msra.mxu0 0.0
    %853 = vmatprep.subr.mxu0 0.0
    %854 = vmatpush1.msra.mxu0 0.0
    %855 = vmatprep.subr.mxu0 0.0
    %856 = vmatpush1.msra.mxu0 0.0
    %857 = vmatprep.subr.mxu0 0.0
    %858 = vmatpush1.msra.mxu0 0.0
    %859 = vmatprep.subr.mxu0 0.0
    %860 = vmatpush1.msra.mxu0 0.0
    %861 = vmatprep.mubr.f32.mxu0 0.0
    %862 = vmatmul.mubr.f32.gmra.mrb[0].mxu0 %v795
    %v863 = vpop.f32.mrb[0].mxu0
    %v864 = vadd.f32 0.0, %v863
    %v865 = vpop.f32.mrb[0].mxu0
    %866 = vdwg.mxu0
    %v868 = vsel %vm793, %v792, 0
    %870 = vmatprep.subr.mxu0 0.0
    %871 = vmatpush1.msra.mxu0 %v596
    %872 = vmatprep.subr.mxu0 0.0
    %873 = vmatpush1.msra.mxu0 0.0
    %874 = vmatprep.subr.mxu0 0.0
    %875 = vmatpush1.msra.mxu0 0.0
    %876 = vmatprep.subr.mxu0 0.0
    %877 = vmatpush1.msra.mxu0 0.0
    %878 = vmatprep.subr.mxu0 0.0
    %879 = vmatpush1.msra.mxu0 0.0
    %880 = vmatprep.subr.mxu0 0.0
    %881 = vmatpush1.msra.mxu0 0.0
    %882 = vmatprep.subr.mxu0 0.0
    %883 = vmatpush1.msra.mxu0 0.0
    %884 = vmatprep.subr.mxu0 0.0
    %885 = vmatpush1.msra.mxu0 0.0
    %886 = vmatprep.subr.mxu0 0.0
    %887 = vmatpush1.msra.mxu0 0.0
    %888 = vmatprep.subr.mxu0 0.0
    %889 = vmatpush1.msra.mxu0 0.0
    %890 = vmatprep.subr.mxu0 0.0
    %891 = vmatpush1.msra.mxu0 0.0
    %892 = vmatprep.subr.mxu0 0.0
    %893 = vmatpush1.msra.mxu0 0.0
    %894 = vmatprep.subr.mxu0 0.0
    %895 = vmatpush1.msra.mxu0 0.0
    %896 = vmatprep.subr.mxu0 0.0
    %897 = vmatpush1.msra.mxu0 0.0
    %898 = vmatprep.subr.mxu0 0.0
    %899 = vmatpush1.msra.mxu0 0.0
    %900 = vmatprep.subr.mxu0 0.0
    %901 = vmatpush1.msra.mxu0 0.0
    %902 = vmatprep.subr.mxu0 0.0
    %903 = vmatpush1.msra.mxu0 0.0
    %904 = vmatprep.subr.mxu0 0.0
    %905 = vmatpush1.msra.mxu0 0.0
    %906 = vmatprep.subr.mxu0 0.0
    %907 = vmatpush1.msra.mxu0 0.0
    %908 = vmatprep.subr.mxu0 0.0
    %909 = vmatpush1.msra.mxu0 0.0
    %910 = vmatprep.subr.mxu0 0.0
    %911 = vmatpush1.msra.mxu0 0.0
    %912 = vmatprep.subr.mxu0 0.0
    %913 = vmatpush1.msra.mxu0 0.0
    %914 = vmatprep.subr.mxu0 0.0
    %915 = vmatpush1.msra.mxu0 0.0
    %916 = vmatprep.subr.mxu0 0.0
    %917 = vmatpush1.msra.mxu0 0.0
    %918 = vmatprep.subr.mxu0 0.0
    %919 = vmatpush1.msra.mxu0 0.0
    %920 = vmatprep.subr.mxu0 0.0
    %921 = vmatpush1.msra.mxu0 0.0
    %922 = vmatprep.subr.mxu0 0.0
    %923 = vmatpush1.msra.mxu0 0.0
    %924 = vmatprep.subr.mxu0 0.0
    %925 = vmatpush1.msra.mxu0 0.0
    %926 = vmatprep.subr.mxu0 0.0
    %927 = vmatpush1.msra.mxu0 0.0
    %928 = vmatprep.subr.mxu0 0.0
    %929 = vmatpush1.msra.mxu0 0.0
    %930 = vmatprep.subr.mxu0 0.0
    %931 = vmatpush1.msra.mxu0 0.0
    %932 = vmatprep.subr.mxu0 0.0
    %933 = vmatpush1.msra.mxu0 0.0
    %934 = vmatprep.mubr.f32.mxu0 0.0
    %935 = vmatmul.mubr.f32.gmra.mrb[0].mxu0 %v868
    %v936 = vpop.f32.mrb[0].mxu0
    %v937 = vadd.f32 0.0, %v936
    %v938 = vpop.f32.mrb[0].mxu0
    %939 = vdwg.mxu0
    %v940 = vld [vmem:[%s8] sm:$0xff]
    %v941 = vld [vmem:[%s8 + $0x8] sm:$0xff]
    %v942 = vld [vmem:[%s8 + $0x10] sm:$0xff]
    %v943 = vld [vmem:[%s8 + $0x18] sm:$0xff]
    %v944 = vld [vmem:[%s9] sm:$0xff]
    %v945 = vld [vmem:[%s9 + $0x8] sm:$0xff]
    %v946 = vld [vmem:[%s9 + $0x10] sm:$0xff]
    %v947 = vld [vmem:[%s9 + $0x18] sm:$0xff]
    %v950 = vrot.slane %v937, 7
    %vm951 = vcmask 1041409
    %v952 = vsel %vm951, %v950, %v864
    %v953 = vsel %vm84, %v952, 0
    %955 = vmatprep.subr.mxu0 0.0
    %956 = vmatpush1.msra.mxu0 %v944
    %957 = vmatprep.subr.mxu0 0.0
    %958 = vmatpush1.msra.mxu0 %v945
    %959 = vmatprep.subr.mxu0 0.0
    %960 = vmatpush1.msra.mxu0 %v946
    %961 = vmatprep.subr.mxu0 0.0
    %962 = vmatpush1.msra.mxu0 %v947
    %963 = vmatprep.subr.mxu0 0.0
    %964 = vmatpush1.msra.mxu0 0.0
    %965 = vmatprep.subr.mxu0 0.0
    %966 = vmatpush1.msra.mxu0 0.0
    %967 = vmatprep.subr.mxu0 0.0
    %968 = vmatpush1.msra.mxu0 0.0
    %969 = vmatprep.subr.mxu0 0.0
    %970 = vmatpush1.msra.mxu0 0.0
    %971 = vmatprep.subr.mxu0 0.0
    %972 = vmatpush1.msra.mxu0 0.0
    %973 = vmatprep.subr.mxu0 0.0
    %974 = vmatpush1.msra.mxu0 0.0
    %975 = vmatprep.subr.mxu0 0.0
    %976 = vmatpush1.msra.mxu0 0.0
    %977 = vmatprep.subr.mxu0 0.0
    %978 = vmatpush1.msra.mxu0 0.0
    %979 = vmatprep.subr.mxu0 0.0
    %980 = vmatpush1.msra.mxu0 0.0
    %981 = vmatprep.subr.mxu0 0.0
    %982 = vmatpush1.msra.mxu0 0.0
    %983 = vmatprep.subr.mxu0 0.0
    %984 = vmatpush1.msra.mxu0 0.0
    %985 = vmatprep.subr.mxu0 0.0
    %986 = vmatpush1.msra.mxu0 0.0
    %987 = vmatprep.subr.mxu0 0.0
    %988 = vmatpush1.msra.mxu0 0.0
    %989 = vmatprep.subr.mxu0 0.0
    %990 = vmatpush1.msra.mxu0 0.0
    %991 = vmatprep.subr.mxu0 0.0
    %992 = vmatpush1.msra.mxu0 0.0
    %993 = vmatprep.subr.mxu0 0.0
    %994 = vmatpush1.msra.mxu0 0.0
    %995 = vmatprep.subr.mxu0 0.0
    %996 = vmatpush1.msra.mxu0 0.0
    %997 = vmatprep.subr.mxu0 0.0
    %998 = vmatpush1.msra.mxu0 0.0
    %999 = vmatprep.subr.mxu0 0.0
    %1000 = vmatpush1.msra.mxu0 0.0
    %1001 = vmatprep.subr.mxu0 0.0
    %1002 = vmatpush1.msra.mxu0 0.0
    %1003 = vmatprep.subr.mxu0 0.0
    %1004 = vmatpush1.msra.mxu0 0.0
    %1005 = vmatprep.subr.mxu0 0.0
    %1006 = vmatpush1.msra.mxu0 0.0
    %1007 = vmatprep.subr.mxu0 0.0
    %1008 = vmatpush1.msra.mxu0 0.0
    %1009 = vmatprep.subr.mxu0 0.0
    %1010 = vmatpush1.msra.mxu0 0.0
    %1011 = vmatprep.subr.mxu0 0.0
    %1012 = vmatpush1.msra.mxu0 0.0
    %1013 = vmatprep.subr.mxu0 0.0
    %1014 = vmatpush1.msra.mxu0 0.0
    %1015 = vmatprep.subr.mxu0 0.0
    %1016 = vmatpush1.msra.mxu0 0.0
    %1017 = vmatprep.subr.mxu0 0.0
    %1018 = vmatpush1.msra.mxu0 0.0
    %1019 = vmatprep.mubr.f32.mxu0 0.0
    %1020 = vmatmul.mubr.f32.gmra.mrb[0].mxu0 %v953
    %v1021 = vpop.f32.mrb[0].mxu0
    %v1022 = vadd.f32 0.0, %v1021
    %v1023 = vpop.f32.mrb[0].mxu0
    %1024 = vdwg.mxu0
    %v1025 = vsel %vm84, %v594, 0
    %1027 = vmatprep.subr.mxu0 0.0
    %1028 = vmatpush1.msra.mxu0 %v940
    %1029 = vmatprep.subr.mxu0 0.0
    %1030 = vmatpush1.msra.mxu0 %v941
    %1031 = vmatprep.subr.mxu0 0.0
    %1032 = vmatpush1.msra.mxu0 %v942
    %1033 = vmatprep.subr.mxu0 0.0
    %1034 = vmatpush1.msra.mxu0 %v943
    %1035 = vmatprep.subr.mxu0 0.0
    %1036 = vmatpush1.msra.mxu0 0.0
    %1037 = vmatprep.subr.mxu0 0.0
    %1038 = vmatpush1.msra.mxu0 0.0
    %1039 = vmatprep.subr.mxu0 0.0
    %1040 = vmatpush1.msra.mxu0 0.0
    %1041 = vmatprep.subr.mxu0 0.0
    %1042 = vmatpush1.msra.mxu0 0.0
    %1043 = vmatprep.subr.mxu0 0.0
    %1044 = vmatpush1.msra.mxu0 0.0
    %1045 = vmatprep.subr.mxu0 0.0
    %1046 = vmatpush1.msra.mxu0 0.0
    %1047 = vmatprep.subr.mxu0 0.0
    %1048 = vmatpush1.msra.mxu0 0.0
    %1049 = vmatprep.subr.mxu0 0.0
    %1050 = vmatpush1.msra.mxu0 0.0
    %1051 = vmatprep.subr.mxu0 0.0
    %1052 = vmatpush1.msra.mxu0 0.0
    %1053 = vmatprep.subr.mxu0 0.0
    %1054 = vmatpush1.msra.mxu0 0.0
    %1055 = vmatprep.subr.mxu0 0.0
    %1056 = vmatpush1.msra.mxu0 0.0
    %1057 = vmatprep.subr.mxu0 0.0
    %1058 = vmatpush1.msra.mxu0 0.0
    %1059 = vmatprep.subr.mxu0 0.0
    %1060 = vmatpush1.msra.mxu0 0.0
    %1061 = vmatprep.subr.mxu0 0.0
    %1062 = vmatpush1.msra.mxu0 0.0
    %1063 = vmatprep.subr.mxu0 0.0
    %1064 = vmatpush1.msra.mxu0 0.0
    %1065 = vmatprep.subr.mxu0 0.0
    %1066 = vmatpush1.msra.mxu0 0.0
    %1067 = vmatprep.subr.mxu0 0.0
    %1068 = vmatpush1.msra.mxu0 0.0
    %1069 = vmatprep.subr.mxu0 0.0
    %1070 = vmatpush1.msra.mxu0 0.0
    %1071 = vmatprep.subr.mxu0 0.0
    %1072 = vmatpush1.msra.mxu0 0.0
    %1073 = vmatprep.subr.mxu0 0.0
    %1074 = vmatpush1.msra.mxu0 0.0
    %1075 = vmatprep.subr.mxu0 0.0
    %1076 = vmatpush1.msra.mxu0 0.0
    %1077 = vmatprep.subr.mxu0 0.0
    %1078 = vmatpush1.msra.mxu0 0.0
    %1079 = vmatprep.subr.mxu0 0.0
    %1080 = vmatpush1.msra.mxu0 0.0
    %1081 = vmatprep.subr.mxu0 0.0
    %1082 = vmatpush1.msra.mxu0 0.0
    %1083 = vmatprep.subr.mxu0 0.0
    %1084 = vmatpush1.msra.mxu0 0.0
    %1085 = vmatprep.subr.mxu0 0.0
    %1086 = vmatpush1.msra.mxu0 0.0
    %1087 = vmatprep.subr.mxu0 0.0
    %1088 = vmatpush1.msra.mxu0 0.0
    %1089 = vmatprep.subr.mxu0 0.0
    %1090 = vmatpush1.msra.mxu0 0.0
    %1091 = vmatprep.mubr.f32.mxu0 0.0
    %1092 = vmatmul.mubr.f32.gmra.mrb[0].mxu0 %v1025
    %v1093 = vpop.f32.mrb[0].mxu0
    %v1094 = vadd.f32 %v1022, %v1093
    %v1095 = vpop.f32.mrb[0].mxu0
    %1096 = vdwg.mxu0
    %v1097 = vld [vmem:[%s10] sm:$0x1]
    %v1099 = vlaneseq
    %v1100 = vshrl.u32 %v1099, 7
    %v1101 = vsub.s32 0, %v1100
    %v1102 = vrot.slane %v1097, %v1101
    %v1104 = vadd.f32 %v1094, %v1102
    %v1105 = vtanh.pop %v1104
    %v1106 = vld [vmem:[%s11] sm:$0xff]
    %v1107 = vld [vmem:[%s11 + $0x8] sm:$0xff]
    %v1108 = vld [vmem:[%s11 + $0x10] sm:$0xff]
    %v1109 = vld [vmem:[%s11 + $0x18] sm:$0xff]
    %v1110 = vld [vmem:[%s12] sm:$0x1]
    %v1112 = vlaneseq
    %v1113 = vshrl.u32 %v1112, 7
    %v1114 = vsub.s32 0, %v1113
    %v1115 = vrot.slane %v1110, %v1114
    %v1118 = vsel %vm84, %v1105, 0
    %1120 = vmatprep.subr.mxu0 0.0
    %1121 = vmatpush1.msra.mxu0 %v1106
    %1122 = vmatprep.subr.mxu0 0.0
    %1123 = vmatpush1.msra.mxu0 %v1107
    %1124 = vmatprep.subr.mxu0 0.0
    %1125 = vmatpush1.msra.mxu0 %v1108
    %1126 = vmatprep.subr.mxu0 0.0
    %1127 = vmatpush1.msra.mxu0 %v1109
    %1128 = vmatprep.subr.mxu0 0.0
    %1129 = vmatpush1.msra.mxu0 0.0
    %1130 = vmatprep.subr.mxu0 0.0
    %1131 = vmatpush1.msra.mxu0 0.0
    %1132 = vmatprep.subr.mxu0 0.0
    %1133 = vmatpush1.msra.mxu0 0.0
    %1134 = vmatprep.subr.mxu0 0.0
    %1135 = vmatpush1.msra.mxu0 0.0
    %1136 = vmatprep.subr.mxu0 0.0
    %1137 = vmatpush1.msra.mxu0 0.0
    %1138 = vmatprep.subr.mxu0 0.0
    %1139 = vmatpush1.msra.mxu0 0.0
    %1140 = vmatprep.subr.mxu0 0.0
    %1141 = vmatpush1.msra.mxu0 0.0
    %1142 = vmatprep.subr.mxu0 0.0
    %1143 = vmatpush1.msra.mxu0 0.0
    %1144 = vmatprep.subr.mxu0 0.0
    %1145 = vmatpush1.msra.mxu0 0.0
    %1146 = vmatprep.subr.mxu0 0.0
    %1147 = vmatpush1.msra.mxu0 0.0
    %1148 = vmatprep.subr.mxu0 0.0
    %1149 = vmatpush1.msra.mxu0 0.0
    %1150 = vmatprep.subr.mxu0 0.0
    %1151 = vmatpush1.msra.mxu0 0.0
    %1152 = vmatprep.subr.mxu0 0.0
    %1153 = vmatpush1.msra.mxu0 0.0
    %1154 = vmatprep.subr.mxu0 0.0
    %1155 = vmatpush1.msra.mxu0 0.0
    %1156 = vmatprep.subr.mxu0 0.0
    %1157 = vmatpush1.msra.mxu0 0.0
    %1158 = vmatprep.subr.mxu0 0.0
    %1159 = vmatpush1.msra.mxu0 0.0
    %1160 = vmatprep.subr.mxu0 0.0
    %1161 = vmatpush1.msra.mxu0 0.0
    %1162 = vmatprep.subr.mxu0 0.0
    %1163 = vmatpush1.msra.mxu0 0.0
    %1164 = vmatprep.subr.mxu0 0.0
    %1165 = vmatpush1.msra.mxu0 0.0
    %1166 = vmatprep.subr.mxu0 0.0
    %1167 = vmatpush1.msra.mxu0 0.0
    %1168 = vmatprep.subr.mxu0 0.0
    %1169 = vmatpush1.msra.mxu0 0.0
    %1170 = vmatprep.subr.mxu0 0.0
    %1171 = vmatpush1.msra.mxu0 0.0
    %1172 = vmatprep.subr.mxu0 0.0
    %1173 = vmatpush1.msra.mxu0 0.0
    %1174 = vmatprep.subr.mxu0 0.0
    %1175 = vmatpush1.msra.mxu0 0.0
    %1176 = vmatprep.subr.mxu0 0.0
    %1177 = vmatpush1.msra.mxu0 0.0
    %1178 = vmatprep.subr.mxu0 0.0
    %1179 = vmatpush1.msra.mxu0 0.0
    %1180 = vmatprep.subr.mxu0 0.0
    %1181 = vmatpush1.msra.mxu0 0.0
    %1182 = vmatprep.subr.mxu0 0.0
    %1183 = vmatpush1.msra.mxu0 0.0
    %1184 = vmatprep.mubr.f32.mxu0 0.0
    %1185 = vmatmul.mubr.f32.gmra.mrb[0].mxu0 %v1118
    %v1186 = vpop.f32.mrb[0].mxu0
    %v1187 = vadd.f32 %v1115, %v1186
    %v1188 = vpop.f32.mrb[0].mxu0
    %1189 = vdwg.mxu0
    %v1190 = vlaneseq
    %v1191 = vand.u32 %v1190, 127
    %vm1192 = vcmp.lt.s32.totalorder %v1191, 16
    %v1193 = vsel %vm1192, %v1187, -1e+30
    %vm1194 = vcmask 1041408
    %v1195 = vsel %vm1194, %v1193, -inf
    %1196 = vmax.xlane.f32.xlu0 %v1195
    %v1197 = vpop.xlane.xlu0 %1196
    %v1198 = vsub.f32 %v1193, %v1197
    %v1199 = vmul.f32 %v1198, 1.442695
    %v1200 = vpow.pop %v1199
    %v1201 = vsel %vm1194, %v1200, 0.0
    %1202 = vadd.xlane.f32.xlu0 %v1201
    %v1203 = vpop.xlane.xlu0 %1202
    %v1204 = vrcp.pop %v1203
    %v1205 = vmul.f32 %v1200, %v1204
    %1206 = vst [vmem:[#allocation5] sm:$0x3] %v1205
    %vm1207 = vcmask 254976
    %1208 = vst.msk [vmem:[#allocation2] sm:$0x3] %vm1207, %v594
    // Predicated region
    $region54: #{luong_attn_decode.1} parent=1 // pred_check
      %p1209 = pneg %p52
    $region55: #{luong_attn_decode.1} parent=1 // pred_check_branch
      %1211 = sbr.rel (%p1209) target = $region57
    $region56: #{luong_attn_decode.1} parent=1 // pred_region
      %1212 = vst.msk [vmem:[#allocation7] sm:$0x3] %vm1207, %v594
    $region57: #{luong_attn_decode.1} parent=1 // pred_fallthru
      _
    // Predicated region
    $region58: #{luong_attn_decode.1} parent=1 // pred_check
      _
    $region59: #{luong_attn_decode.1} parent=1 // pred_check_branch
      %1214 = sbr.rel (0) target = $region61
    $region60: #{luong_attn_decode.1} parent=1 // pred_region
      %s1216 = ssub.s32 32, 32
      %1217 = vsyncadd [#allocation6], %s1216
      %s1219 = sshll.u32 [#allocation5], 4
      %s1220 = int_to_ptr.vmem [resolvable:$true] %s1219
      %1222 = dma.vmem_to_hbm [thread:$0]  %s1220, 32, %s13, [#allocation6]
    $region61: #{luong_attn_decode.1} parent=1 // pred_fallthru
      _
    // Predicated region
    $region62: #{luong_attn_decode.1} parent=1 // pred_check
      _
    $region63: #{luong_attn_decode.1} parent=1 // pred_check_branch
      %1224 = sbr.rel (0) target = $region65
    $region64: #{luong_attn_decode.1} parent=1 // pred_region
      %s1226 = ssub.s32 32, 32
      %1227 = vsyncadd [#allocation8], %s1226
      %s1229 = sshll.u32 [#allocation7], 4
      %s1230 = int_to_ptr.vmem [resolvable:$true] %s1229
      %1232 = dma.vmem_to_hbm [thread:$0]  %s1230, 32, %s14, [#allocation8]
    $region65: #{luong_attn_decode.1} parent=1 // pred_fallthru
      _
    // Predicated region
    $region66: #{luong_attn_decode.1} parent=1 // pred_check
      _
    $region67: #{luong_attn_decode.1} parent=1 // pred_check_branch
      %1234 = sbr.rel (0) target = $region69
    $region68: #{luong_attn_decode.1} parent=1 // pred_region
      %1235 = dma.done [#allocation6], 32
    $region69: #{luong_attn_decode.1} parent=1 // pred_fallthru
      _
    // Predicated region
    $region70: #{luong_attn_decode.1} parent=1 // pred_check
      _
    $region71: #{luong_attn_decode.1} parent=1 // pred_check_branch
      %1237 = sbr.rel (0) target = $region73
    $region72: #{luong_attn_decode.1} parent=1 // pred_region
      %1238 = dma.done [#allocation8], 32
    $region73: #{luong_attn_decode.1} parent=1 // pred_fallthru
      _
    %1239 = vsyncpa [#allocation6], 1
    %1240 = vsyncpa [#allocation8], 1

</llo_original>
